<compile_context>
chip_gen: v7x
topology: tpu7x:2x2x1
jax: 0.10.0
libtpu: 0.0.40
codegen_flags: <defaults>
</compile_context>

<pallas_src>
import functools

import jax
import jax.numpy as jnp
from jax.experimental import pallas as pl
from jax.experimental.pallas import tpu as pltpu


# ----------------------------- tuning helpers -------------------------------

def _round_up(x: int, m: int) -> int:
    return ((x + m - 1) // m) * m


def _tpu_tuning():
    """Returns (row-tile cap, vmem_limit_bytes, softmax exp dtype)."""
    try:
        kind = jax.devices()[0].device_kind.lower()
    except Exception:
        kind = ""
    if "v7" in kind or "7x" in kind:
        # 64 MiB physical VMEM per TensorCore: smaller tiles, tighter limit.
        return 256, 48 * 1024 * 1024, jnp.bfloat16
    if "v6" in kind:
        return 512, 96 * 1024 * 1024, jnp.bfloat16
    if "v5" in kind:
        # 128 MiB VMEM but no bf16 EUP -> keep the exp in f32.
        return 512, 96 * 1024 * 1024, jnp.float32
    if "v2" in kind or "v3" in kind or "v4" in kind:
        return 512, 64 * 1024 * 1024, jnp.float32
    # Unknown chip: conservative VMEM budget; bf16 exp is numerically fine.
    return 256, 48 * 1024 * 1024, jnp.bfloat16


def _tiling(n: int, cap: int):
    """Pick (row tile TM, padded node count) with TM | n_pad and TM % 8 == 0."""
    if n <= cap:
        t = _round_up(n, 8)
        return t, t
    n_pad = _round_up(n, 128)
    for t in (cap, 256, 128):
        if t <= cap and n_pad % t == 0:
            return t, n_pad
    return 128, n_pad  # n_pad is a multiple of 128, so this is never reached


# --------------------------------- kernels -----------------------------------

def _proj_kernel(h_ref, w_ref, a_ref, wh_ref, wha_ref):
    """Fused multi-head linear transform for one row tile.

    h_ref  : (TM, F_in)       bf16 node features
    w_ref  : (F_in, H*F_out)  bf16 concatenated head weights
    a_ref  : (H*F_out, 2*H)   f32 block-diagonal packing of [a1 | a2] per head
    wh_ref : (TM, H*F_out)    bf16 Wh slab (values for aggregation)
    wha_ref: (TM, 2*H)        f32 [Wh@a1 | Wh@a2] per head
    """
    wh = jnp.dot(h_ref[...], w_ref[...], preferred_element_type=jnp.float32)
    wha_ref[...] = jnp.dot(wh, a_ref[...], preferred_element_type=jnp.float32)
    wh_ref[...] = wh.astype(jnp.bfloat16)


def _attention_kernel(wh_ref, adj_ref, src_ref, dst_ref, out_ref, *,
                      nheads: int, f_out: int, alpha: float, concat: bool,
                      exp_dtype):
    """One query-row tile; all heads handled in-kernel.

    wh_ref  : (N, H*F_out) bf16  transformed features of every node
    adj_ref : (TM, N)      int8  adjacency row tile (used only as > 0 mask)
    src_ref : (TM, H)      f32   Wh@a1 for the query rows, per head
    dst_ref : (H, N)       f32   Wh@a2 for all neighbours, pre-transposed
    out_ref : (TM, H*F_out)      concatenated per-head outputs
    """
    neg_fill = jnp.float32(-9.0e15)
    # Mask computed once per row tile in f32-native layout, shared by all heads.
    adj_mask = adj_ref[...].astype(jnp.float32) > 0

    for hd in range(nheads):  # static unroll over heads
        # LeakyReLU attention logits + adjacency masking.
        e = src_ref[:, hd:hd + 1] + dst_ref[hd:hd + 1, :]              # (TM, N)
        e = jnp.where(e > 0, e, alpha * e)
        att = jnp.where(adj_mask, e, neg_fill)
        att = att - jnp.max(att, axis=1, keepdims=True)
        # Unnormalised softmax weights; exp runs in bf16 on v6e/v7x (EUP).
        p = jnp.exp(att.astype(exp_dtype))
        denom = jnp.sum(p.astype(jnp.float32), axis=1, keepdims=True)
        # Aggregate on the MXU, then normalise the small (TM, F_out) result
        # (cheaper than scaling the (TM, N) probability matrix).
        hp = jnp.dot(p.astype(jnp.bfloat16),
                     wh_ref[:, hd * f_out:(hd + 1) * f_out],
                     preferred_element_type=jnp.float32)
        hp = hp * pl.reciprocal(denom, approx=True)
        if concat:
            # ELU(alpha=1); exp(min(x,0)) keeps the unselected branch finite.
            hp = jnp.where(hp > 0, hp, jnp.exp(jnp.minimum(hp, 0.0)) - 1.0)
        out_ref[:, hd * f_out:(hd + 1) * f_out] = hp.astype(out_ref.dtype)


# ------------------------------ layer wrapper ---------------------------------

def gat_attention_layer(h_bf16, adj_i8, w_cat_bf16, a_mat, *, nheads, f_out,
                        alpha, concat, out_dtype, tm, exp_dtype, vmem_limit):
    """One GraphAttentionLayer (all heads). Returns (N_pad, H*F_out)."""
    n_pad, f_in = h_bf16.shape
    hfo = nheads * f_out
    grid = (n_pad // tm,)
    cparams = pltpu.CompilerParams(dimension_semantics=("parallel",),
                                   vmem_limit_bytes=vmem_limit)

    # 1) Fused multi-head linear transform + attention-coefficient projections.
    wh, wha = pl.pallas_call(
        _proj_kernel,
        out_shape=(jax.ShapeDtypeStruct((n_pad, hfo), jnp.bfloat16),
                   jax.ShapeDtypeStruct((n_pad, 2 * nheads), jnp.float32)),
        grid=grid,
        in_specs=[
            pl.BlockSpec((tm, f_in), lambda r: (r, 0)),
            pl.BlockSpec((f_in, hfo), lambda r: (0, 0)),
            pl.BlockSpec((hfo, 2 * nheads), lambda r: (0, 0)),
        ],
        out_specs=(pl.BlockSpec((tm, hfo), lambda r: (r, 0)),
                   pl.BlockSpec((tm, 2 * nheads), lambda r: (r, 0))),
        compiler_params=cparams,
    )(h_bf16, w_cat_bf16, a_mat)

    src = wha[:, :nheads]           # (N, H)  query-node term per head
    dst = wha[:, nheads:].T         # (H, N)  neighbour term, pre-transposed (tiny)

    # 2) Masked-softmax attention + aggregation; all heads per row tile.
    kernel = functools.partial(_attention_kernel, nheads=nheads, f_out=f_out,
                               alpha=alpha, concat=concat, exp_dtype=exp_dtype)
    # TODO(synk): for very large N, add a neighbour-axis grid dimension with an
    # online-softmax accumulator so residency is O(TM*TN) instead of O(TM*N).
    return pl.pallas_call(
        kernel,
        out_shape=jax.ShapeDtypeStruct((n_pad, hfo), out_dtype),
        grid=grid,
        in_specs=[
            pl.BlockSpec((n_pad, hfo), lambda r: (0, 0)),      # Wh slab (resident)
            pl.BlockSpec((tm, n_pad), lambda r: (r, 0)),       # adj row tile (int8)
            pl.BlockSpec((tm, nheads), lambda r: (r, 0)),      # src rows
            pl.BlockSpec((nheads, n_pad), lambda r: (0, 0)),   # dst rows (resident)
        ],
        out_specs=pl.BlockSpec((tm, hfo), lambda r: (r, 0)),
        compiler_params=cparams,
    )(wh, adj_i8, src, dst)


# ----------------------------- parameter setup --------------------------------

def xavier_uniform(key, shape, gain):
    fan_in, fan_out = shape
    bound = gain * jnp.sqrt(6.0 / (fan_in + fan_out))
    return jax.random.uniform(key, shape, jnp.float32, -bound, bound)


def init_gat_params(key, nfeat, nhid, nclass, nheads):
    gain = 1.414
    keys = jax.random.split(key, 2 * nheads + 2)
    w_heads = jnp.stack([xavier_uniform(keys[2 * i], (nfeat, nhid), gain)
                         for i in range(nheads)])                 # (H, nfeat, nhid)
    a_heads = jnp.stack([xavier_uniform(keys[2 * i + 1], (2 * nhid, 1), gain)
                         for i in range(nheads)])                 # (H, 2*nhid, 1)
    w_out = xavier_uniform(keys[-2], (nhid * nheads, nclass), gain)
    a_out = xavier_uniform(keys[-1], (2 * nclass, 1), gain)
    return {"w_heads": w_heads, "a_heads": a_heads,
            "w_out": w_out, "a_out": a_out}


def _pack_layer(w_stack, a_stack):
    """Pack per-head (W, a) into (F_in, H*F_out) bf16 and (H*F_out, 2H) f32."""
    nheads, f_in, f_out = w_stack.shape
    w_cat = jnp.transpose(w_stack, (1, 0, 2)).reshape(f_in, nheads * f_out)
    a1 = a_stack[:, :f_out, 0]                                    # (H, F_out)
    a2 = a_stack[:, f_out:, 0]
    eye = jnp.eye(nheads, dtype=jnp.float32)
    a_src = (a1[:, :, None] * eye[:, None, :]).reshape(nheads * f_out, nheads)
    a_dst = (a2[:, :, None] * eye[:, None, :]).reshape(nheads * f_out, nheads)
    a_mat = jnp.concatenate([a_src, a_dst], axis=1)               # (H*F_out, 2H)
    return w_cat.astype(jnp.bfloat16), a_mat


# --------------------------------- forward ------------------------------------

def gat_forward(x, adj, params, *, alpha: float):
    n = x.shape[0]
    nheads, _, nhid = params["w_heads"].shape
    nclass = params["w_out"].shape[1]

    tm_cap, vmem_limit, exp_dtype = _tpu_tuning()
    tm, n_pad = _tiling(n, tm_cap)

    # Zero-pad nodes once.  Padded rows/cols carry adj == 0, so they are masked
    # out of every real row's softmax; padded output rows are sliced off below.
    x_p = jnp.zeros((n_pad, x.shape[1]), jnp.bfloat16).at[:n, :].set(
        x.astype(jnp.bfloat16))
    adj_p = jnp.zeros((n_pad, n_pad), jnp.int8).at[:n, :n].set(
        (adj > 0).astype(jnp.int8))

    w_cat1, a_mat1 = _pack_layer(params["w_heads"], params["a_heads"])
    w_cat2, a_mat2 = _pack_layer(params["w_out"][None], params["a_out"][None])

    common = dict(alpha=alpha, tm=tm, exp_dtype=exp_dtype, vmem_limit=vmem_limit)
    # Layer 1: nheads attention heads, ELU, concatenated bf16 hidden activations.
    h1 = gat_attention_layer(x_p, adj_p, w_cat1, a_mat1, nheads=nheads,
                             f_out=nhid, concat=True, out_dtype=jnp.bfloat16,
                             **common)
    # Layer 2: single output attention head (no ELU), f32 logits.
    out = gat_attention_layer(h1, adj_p, w_cat2, a_mat2, nheads=1,
                              f_out=nclass, concat=False, out_dtype=jnp.float32,
                              **common)
    return out[:n]


# --------------------------------- demo ----------------------------------------

if __name__ == "__main__":
    N = 8         # number of nodes
    nfeat = 16
    nhid = 8
    nclass = 4
    nheads = 4
    alpha = 0.2

    key = jax.random.PRNGKey(0)
    k_x, k_adj, k_p = jax.random.split(key, 3)

    x = jax.random.normal(k_x, (N, nfeat), jnp.float32)
    # Random symmetric binary adjacency with self-loops.
    adj_rand = (jax.random.uniform(k_adj, (N, N)) > 0.5).astype(jnp.float32)
    adj = jnp.clip(adj_rand + adj_rand.T + jnp.eye(N, dtype=jnp.float32), 0.0, 1.0)

    params = init_gat_params(k_p, nfeat, nhid, nclass, nheads)

    fwd = jax.jit(functools.partial(gat_forward, alpha=alpha))
    out = jax.block_until_ready(fwd(x, adj, params))
    assert out.shape == (N, nclass), out.shape
    assert bool(jnp.all(jnp.isfinite(out)))
    print("KERNEL_OK")
</pallas_src>

<mosaic_0001>
module attributes {stable_mosaic.version = 11 : i64} {
  func.func @_proj_kernel(%arg0: i32, %arg1: memref<8x32xbf16, #tpu.memory_space<vmem>>, %arg2: memref<32x4xbf16, #tpu.memory_space<vmem>>, %arg3: memref<4x2xf32, #tpu.memory_space<vmem>>, %arg4: memref<8x4xbf16, #tpu.memory_space<vmem>>, %arg5: memref<8x2xf32, #tpu.memory_space<vmem>>) attributes {dimension_semantics = [#tpu.dimension_semantics<parallel>], iteration_bounds = array<i64: 1>, scalar_prefetch = 0 : i64, scratch_operands = 0 : i64, tpu.core_type = #tpu.core_type<tc>, window_params = [{transform_indices = @transform_0, window_bounds = array<i64: 8, 32>}, {pipeline_mode = #tpu.pipeline_mode<synchronous>, transform_indices = @transform_1, window_bounds = array<i64: 32, 4>}, {pipeline_mode = #tpu.pipeline_mode<synchronous>, transform_indices = @transform_2, window_bounds = array<i64: 4, 2>}, {transform_indices = @transform_3, window_bounds = array<i64: 8, 4>}, {transform_indices = @transform_4, window_bounds = array<i64: 8, 2>}]} {
    %c0 = arith.constant 0 : index
    %c0_0 = arith.constant 0 : index
    %0 = vector.load %arg1[%c0, %c0_0] : memref<8x32xbf16, #tpu.memory_space<vmem>>, vector<8x32xbf16>
    %c0_1 = arith.constant 0 : index
    %c0_2 = arith.constant 0 : index
    %1 = vector.load %arg2[%c0_1, %c0_2] : memref<32x4xbf16, #tpu.memory_space<vmem>>, vector<32x4xbf16>
    %cst = arith.constant dense<0.000000e+00> : vector<8x4xf32>
    %2 = tpu.matmul %0, %1, %cst {dimension_numbers = #tpu.dot_dimension_numbers<[1], [0], [0], [1], [0, 0, 1, 1], [], []>} : vector<8x32xbf16>, vector<32x4xbf16>, vector<8x4xf32> -> vector<8x4xf32>
    %c0_3 = arith.constant 0 : index
    %c0_4 = arith.constant 0 : index
    %3 = vector.load %arg3[%c0_3, %c0_4] : memref<4x2xf32, #tpu.memory_space<vmem>>, vector<4x2xf32>
    %cst_5 = arith.constant dense<0.000000e+00> : vector<8x2xf32>
    %4 = tpu.matmul %2, %3, %cst_5 {dimension_numbers = #tpu.dot_dimension_numbers<[1], [0], [0], [1], [0, 0, 1, 1], [], []>} : vector<8x4xf32>, vector<4x2xf32>, vector<8x2xf32> -> vector<8x2xf32>
    %c0_6 = arith.constant 0 : index
    %c0_7 = arith.constant 0 : index
    %5 = vector.load %arg5[%c0_6, %c0_7] : memref<8x2xf32, #tpu.memory_space<vmem>>, vector<8x2xf32>
    tpu.vector_store %arg5[%c0_6, %c0_7], %4 {strides = array<i32>} : memref<8x2xf32, #tpu.memory_space<vmem>>, vector<8x2xf32>,
    %6 = arith.truncf %2 : vector<8x4xf32> to vector<8x4xbf16>
    %c0_8 = arith.constant 0 : index
    %c0_9 = arith.constant 0 : index
    %7 = vector.load %arg4[%c0_8, %c0_9] : memref<8x4xbf16, #tpu.memory_space<vmem>>, vector<8x4xbf16>
    tpu.vector_store %arg4[%c0_8, %c0_9], %6 {strides = array<i32>} : memref<8x4xbf16, #tpu.memory_space<vmem>>, vector<8x4xbf16>,
    return
  }
  func.func @transform_0(%arg0: i32) -> (i32, i32) {
    %c0_i32 = arith.constant 0 : i32
    %c0_i32_0 = arith.constant 0 : i32
    return %arg0, %c0_i32 : i32, i32
  }
  func.func @transform_1(%arg0: i32) -> (i32, i32) {
    %c0_i32 = arith.constant 0 : i32
    %c0_i32_0 = arith.constant 0 : i32
    %c0_i32_1 = arith.constant 0 : i32
    return %c0_i32, %c0_i32_0 : i32, i32
  }
  func.func @transform_2(%arg0: i32) -> (i32, i32) {
    %c0_i32 = arith.constant 0 : i32
    %c0_i32_0 = arith.constant 0 : i32
    %c0_i32_1 = arith.constant 0 : i32
    return %c0_i32, %c0_i32_0 : i32, i32
  }
  func.func @transform_3(%arg0: i32) -> (i32, i32) {
    %c0_i32 = arith.constant 0 : i32
    %c0_i32_0 = arith.constant 0 : i32
    return %arg0, %c0_i32 : i32, i32
  }
  func.func @transform_4(%arg0: i32) -> (i32, i32) {
    %c0_i32 = arith.constant 0 : i32
    %c0_i32_0 = arith.constant 0 : i32
    return %arg0, %c0_i32 : i32, i32
  }
}

module attributes {stable_mosaic.version = 11 : i64} {
  func.func @_proj_kernel(%arg0: i32, %arg1: memref<8x16xbf16, #tpu.memory_space<vmem>>, %arg2: memref<16x32xbf16, #tpu.memory_space<vmem>>, %arg3: memref<32x8xf32, #tpu.memory_space<vmem>>, %arg4: memref<8x32xbf16, #tpu.memory_space<vmem>>, %arg5: memref<8x8xf32, #tpu.memory_space<vmem>>) attributes {dimension_semantics = [#tpu.dimension_semantics<parallel>], iteration_bounds = array<i64: 1>, scalar_prefetch = 0 : i64, scratch_operands = 0 : i64, tpu.core_type = #tpu.core_type<tc>, window_params = [{transform_indices = @transform_0, window_bounds = array<i64: 8, 16>}, {pipeline_mode = #tpu.pipeline_mode<synchronous>, transform_indices = @transform_1, window_bounds = array<i64: 16, 32>}, {pipeline_mode = #tpu.pipeline_mode<synchronous>, transform_indices = @transform_2, window_bounds = array<i64: 32, 8>}, {transform_indices = @transform_3, window_bounds = array<i64: 8, 32>}, {transform_indices = @transform_4, window_bounds = array<i64: 8, 8>}]} {
    %c0 = arith.constant 0 : index
    %c0_0 = arith.constant 0 : index
    %0 = vector.load %arg1[%c0, %c0_0] : memref<8x16xbf16, #tpu.memory_space<vmem>>, vector<8x16xbf16>
    %c0_1 = arith.constant 0 : index
    %c0_2 = arith.constant 0 : index
    %1 = vector.load %arg2[%c0_1, %c0_2] : memref<16x32xbf16, #tpu.memory_space<vmem>>, vector<16x32xbf16>
    %cst = arith.constant dense<0.000000e+00> : vector<8x32xf32>
    %2 = tpu.matmul %0, %1, %cst {dimension_numbers = #tpu.dot_dimension_numbers<[1], [0], [0], [1], [0, 0, 1, 1], [], []>} : vector<8x16xbf16>, vector<16x32xbf16>, vector<8x32xf32> -> vector<8x32xf32>
    %c0_3 = arith.constant 0 : index
    %c0_4 = arith.constant 0 : index
    %3 = vector.load %arg3[%c0_3, %c0_4] : memref<32x8xf32, #tpu.memory_space<vmem>>, vector<32x8xf32>
    %cst_5 = arith.constant dense<0.000000e+00> : vector<8x8xf32>
    %4 = tpu.matmul %2, %3, %cst_5 {dimension_numbers = #tpu.dot_dimension_numbers<[1], [0], [0], [1], [0, 0, 1, 1], [], []>} : vector<8x32xf32>, vector<32x8xf32>, vector<8x8xf32> -> vector<8x8xf32>
    %c0_6 = arith.constant 0 : index
    %c0_7 = arith.constant 0 : index
    %5 = vector.load %arg5[%c0_6, %c0_7] : memref<8x8xf32, #tpu.memory_space<vmem>>, vector<8x8xf32>
    tpu.vector_store %arg5[%c0_6, %c0_7], %4 {strides = array<i32>} : memref<8x8xf32, #tpu.memory_space<vmem>>, vector<8x8xf32>,
    %6 = arith.truncf %2 : vector<8x32xf32> to vector<8x32xbf16>
    %c0_8 = arith.constant 0 : index
    %c0_9 = arith.constant 0 : index
    %7 = vector.load %arg4[%c0_8, %c0_9] : memref<8x32xbf16, #tpu.memory_space<vmem>>, vector<8x32xbf16>
    tpu.vector_store %arg4[%c0_8, %c0_9], %6 {strides = array<i32>} : memref<8x32xbf16, #tpu.memory_space<vmem>>, vector<8x32xbf16>,
    return
  }
  func.func @transform_0(%arg0: i32) -> (i32, i32) {
    %c0_i32 = arith.constant 0 : i32
    %c0_i32_0 = arith.constant 0 : i32
    return %arg0, %c0_i32 : i32, i32
  }
  func.func @transform_1(%arg0: i32) -> (i32, i32) {
    %c0_i32 = arith.constant 0 : i32
    %c0_i32_0 = arith.constant 0 : i32
    %c0_i32_1 = arith.constant 0 : i32
    return %c0_i32, %c0_i32_0 : i32, i32
  }
  func.func @transform_2(%arg0: i32) -> (i32, i32) {
    %c0_i32 = arith.constant 0 : i32
    %c0_i32_0 = arith.constant 0 : i32
    %c0_i32_1 = arith.constant 0 : i32
    return %c0_i32, %c0_i32_0 : i32, i32
  }
  func.func @transform_3(%arg0: i32) -> (i32, i32) {
    %c0_i32 = arith.constant 0 : i32
    %c0_i32_0 = arith.constant 0 : i32
    return %arg0, %c0_i32 : i32, i32
  }
  func.func @transform_4(%arg0: i32) -> (i32, i32) {
    %c0_i32 = arith.constant 0 : i32
    %c0_i32_0 = arith.constant 0 : i32
    return %arg0, %c0_i32 : i32, i32
  }
}

module attributes {stable_mosaic.version = 11 : i64} {
  func.func @_attention_kernel(%arg0: i32, %arg1: memref<8x32xbf16, #tpu.memory_space<vmem>>, %arg2: memref<8x8xi8, #tpu.memory_space<vmem>>, %arg3: memref<8x4xf32, #tpu.memory_space<vmem>>, %arg4: memref<4x8xf32, #tpu.memory_space<vmem>>, %arg5: memref<8x32xbf16, #tpu.memory_space<vmem>>) attributes {dimension_semantics = [#tpu.dimension_semantics<parallel>], iteration_bounds = array<i64: 1>, scalar_prefetch = 0 : i64, scratch_operands = 0 : i64, tpu.core_type = #tpu.core_type<tc>, window_params = [{pipeline_mode = #tpu.pipeline_mode<synchronous>, transform_indices = @transform_0, window_bounds = array<i64: 8, 32>}, {transform_indices = @transform_1, window_bounds = array<i64: 8, 8>}, {transform_indices = @transform_2, window_bounds = array<i64: 8, 4>}, {pipeline_mode = #tpu.pipeline_mode<synchronous>, transform_indices = @transform_3, window_bounds = array<i64: 4, 8>}, {transform_indices = @transform_4, window_bounds = array<i64: 8, 32>}]} {
    %c0 = arith.constant 0 : index
    %c0_0 = arith.constant 0 : index
    %0 = vector.load %arg2[%c0, %c0_0] : memref<8x8xi8, #tpu.memory_space<vmem>>, vector<8x8xi8>
    %1 = arith.sitofp %0 : vector<8x8xi8> to vector<8x8xf32>
    %cst = arith.constant 0.000000e+00 : f32
    %2 = vector.broadcast %cst : f32 to vector<8x8xf32>
    %3 = arith.cmpf ogt, %1, %2 : vector<8x8xf32>
    %c0_1 = arith.constant 0 : index
    %c0_2 = arith.constant 0 : index
    %4 = vector.load %arg3[%c0_1, %c0_2] : memref<8x4xf32, #tpu.memory_space<vmem>>, vector<8x1xf32>
    %c0_3 = arith.constant 0 : index
    %c0_4 = arith.constant 0 : index
    %5 = vector.load %arg4[%c0_3, %c0_4] : memref<4x8xf32, #tpu.memory_space<vmem>>, vector<1x8xf32>
    %6 = vector.broadcast %4 : vector<8x1xf32> to vector<8x8xf32>
    %7 = vector.broadcast %5 : vector<1x8xf32> to vector<8x8xf32>
    %8 = arith.addf %6, %7 : vector<8x8xf32>
    %cst_5 = arith.constant 0.000000e+00 : f32
    %9 = vector.broadcast %cst_5 : f32 to vector<8x8xf32>
    %10 = arith.cmpf ogt, %8, %9 : vector<8x8xf32>
    %cst_6 = arith.constant 2.000000e-01 : f32
    %11 = vector.broadcast %cst_6 : f32 to vector<8x8xf32>
    %12 = arith.mulf %11, %8 : vector<8x8xf32>
    %13 = arith.select %10, %8, %12 : vector<8x8xi1>, vector<8x8xf32>
    %cst_7 = arith.constant -9.000000e+15 : f32
    %14 = vector.broadcast %cst_7 : f32 to vector<8x8xf32>
    %15 = arith.select %3, %13, %14 : vector<8x8xi1>, vector<8x8xf32>
    %cst_8 = arith.constant dense<0xFF800000> : vector<8xf32>
    %16 = vector.multi_reduction <maximumf>, %15, %cst_8 [1] : vector<8x8xf32> to vector<8xf32>
    %17 = vector.shape_cast %16 : vector<8xf32> to vector<8x1xf32>
    %18 = vector.broadcast %17 : vector<8x1xf32> to vector<8x8xf32>
    %19 = arith.subf %15, %18 : vector<8x8xf32>
    %20 = arith.truncf %19 : vector<8x8xf32> to vector<8x8xbf16>
    %21 = math.exp %20 : vector<8x8xbf16>
    %22 = arith.extf %21 : vector<8x8xbf16> to vector<8x8xf32>
    %cst_9 = arith.constant dense<0.000000e+00> : vector<8xf32>
    %23 = vector.multi_reduction <add>, %22, %cst_9 [1] : vector<8x8xf32> to vector<8xf32>
    %24 = vector.shape_cast %23 : vector<8xf32> to vector<8x1xf32>
    %c0_10 = arith.constant 0 : index
    %c0_11 = arith.constant 0 : index
    %25 = vector.load %arg1[%c0_10, %c0_11] : memref<8x32xbf16, #tpu.memory_space<vmem>>, vector<8x8xbf16>
    %cst_12 = arith.constant dense<0.000000e+00> : vector<8x8xf32>
    %26 = tpu.matmul %21, %25, %cst_12 {dimension_numbers = #tpu.dot_dimension_numbers<[1], [0], [0], [1], [0, 0, 1, 1], [], []>} : vector<8x8xbf16>, vector<8x8xbf16>, vector<8x8xf32> -> vector<8x8xf32>
    %27 = tpu.reciprocal %24 {approx = true} : vector<8x1xf32> -> vector<8x1xf32>
    %28 = vector.broadcast %27 : vector<8x1xf32> to vector<8x8xf32>
    %29 = arith.mulf %26, %28 : vector<8x8xf32>
    %cst_13 = arith.constant 0.000000e+00 : f32
    %30 = vector.broadcast %cst_13 : f32 to vector<8x8xf32>
    %31 = arith.cmpf ogt, %29, %30 : vector<8x8xf32>
    %cst_14 = arith.constant 0.000000e+00 : f32
    %32 = vector.broadcast %cst_14 : f32 to vector<8x8xf32>
    %33 = arith.minimumf %29, %32 : vector<8x8xf32>
    %34 = math.exp %33 : vector<8x8xf32>
    %cst_15 = arith.constant 1.000000e+00 : f32
    %35 = vector.broadcast %cst_15 : f32 to vector<8x8xf32>
    %36 = arith.subf %34, %35 : vector<8x8xf32>
    %37 = arith.select %31, %29, %36 : vector<8x8xi1>, vector<8x8xf32>
    %38 = arith.truncf %37 : vector<8x8xf32> to vector<8x8xbf16>
    %c0_16 = arith.constant 0 : index
    %c0_17 = arith.constant 0 : index
    %39 = vector.load %arg5[%c0_16, %c0_17] : memref<8x32xbf16, #tpu.memory_space<vmem>>, vector<8x8xbf16>
    tpu.vector_store %arg5[%c0_16, %c0_17], %38 {strides = array<i32>} : memref<8x32xbf16, #tpu.memory_space<vmem>>, vector<8x8xbf16>,
    %c0_18 = arith.constant 0 : index
    %c1 = arith.constant 1 : index
    %40 = vector.load %arg3[%c0_18, %c1] : memref<8x4xf32, #tpu.memory_space<vmem>>, vector<8x1xf32>
    %c1_19 = arith.constant 1 : index
    %c0_20 = arith.constant 0 : index
    %41 = vector.load %arg4[%c1_19, %c0_20] : memref<4x8xf32, #tpu.memory_space<vmem>>, vector<1x8xf32>
    %42 = vector.broadcast %40 : vector<8x1xf32> to vector<8x8xf32>
    %43 = vector.broadcast %41 : vector<1x8xf32> to vector<8x8xf32>
    %44 = arith.addf %42, %43 : vector<8x8xf32>
    %cst_21 = arith.constant 0.000000e+00 : f32
    %45 = vector.broadcast %cst_21 : f32 to vector<8x8xf32>
    %46 = arith.cmpf ogt, %44, %45 : vector<8x8xf32>
    %cst_22 = arith.constant 2.000000e-01 : f32
    %47 = vector.broadcast %cst_22 : f32 to vector<8x8xf32>
    %48 = arith.mulf %47, %44 : vector<8x8xf32>
    %49 = arith.select %46, %44, %48 : vector<8x8xi1>, vector<8x8xf32>
    %cst_23 = arith.constant -9.000000e+15 : f32
    %50 = vector.broadcast %cst_23 : f32 to vector<8x8xf32>
    %51 = arith.select %3, %49, %50 : vector<8x8xi1>, vector<8x8xf32>
    %cst_24 = arith.constant dense<0xFF800000> : vector<8xf32>
    %52 = vector.multi_reduction <maximumf>, %51, %cst_24 [1] : vector<8x8xf32> to vector<8xf32>
    %53 = vector.shape_cast %52 : vector<8xf32> to vector<8x1xf32>
    %54 = vector.broadcast %53 : vector<8x1xf32> to vector<8x8xf32>
    %55 = arith.subf %51, %54 : vector<8x8xf32>
    %56 = arith.truncf %55 : vector<8x8xf32> to vector<8x8xbf16>
    %57 = math.exp %56 : vector<8x8xbf16>
    %58 = arith.extf %57 : vector<8x8xbf16> to vector<8x8xf32>
    %cst_25 = arith.constant dense<0.000000e+00> : vector<8xf32>
    %59 = vector.multi_reduction <add>, %58, %cst_25 [1] : vector<8x8xf32> to vector<8xf32>
    %60 = vector.shape_cast %59 : vector<8xf32> to vector<8x1xf32>
    %c0_26 = arith.constant 0 : index
    %c8 = arith.constant 8 : index
    %61 = vector.load %arg1[%c0_26, %c8] : memref<8x32xbf16, #tpu.memory_space<vmem>>, vector<8x8xbf16>
    %cst_27 = arith.constant dense<0.000000e+00> : vector<8x8xf32>
    %62 = tpu.matmul %57, %61, %cst_27 {dimension_numbers = #tpu.dot_dimension_numbers<[1], [0], [0], [1], [0, 0, 1, 1], [], []>} : vector<8x8xbf16>, vector<8x8xbf16>, vector<8x8xf32> -> vector<8x8xf32>
    %63 = tpu.reciprocal %60 {approx = true} : vector<8x1xf32> -> vector<8x1xf32>
    %64 = vector.broadcast %63 : vector<8x1xf32> to vector<8x8xf32>
    %65 = arith.mulf %62, %64 : vector<8x8xf32>
    %cst_28 = arith.constant 0.000000e+00 : f32
    %66 = vector.broadcast %cst_28 : f32 to vector<8x8xf32>
    %67 = arith.cmpf ogt, %65, %66 : vector<8x8xf32>
    %cst_29 = arith.constant 0.000000e+00 : f32
    %68 = vector.broadcast %cst_29 : f32 to vector<8x8xf32>
    %69 = arith.minimumf %65, %68 : vector<8x8xf32>
    %70 = math.exp %69 : vector<8x8xf32>
    %cst_30 = arith.constant 1.000000e+00 : f32
    %71 = vector.broadcast %cst_30 : f32 to vector<8x8xf32>
    %72 = arith.subf %70, %71 : vector<8x8xf32>
    %73 = arith.select %67, %65, %72 : vector<8x8xi1>, vector<8x8xf32>
    %74 = arith.truncf %73 : vector<8x8xf32> to vector<8x8xbf16>
    %c0_31 = arith.constant 0 : index
    %c8_32 = arith.constant 8 : index
    %75 = vector.load %arg5[%c0_31, %c8_32] : memref<8x32xbf16, #tpu.memory_space<vmem>>, vector<8x8xbf16>
    tpu.vector_store %arg5[%c0_31, %c8_32], %74 {strides = array<i32>} : memref<8x32xbf16, #tpu.memory_space<vmem>>, vector<8x8xbf16>,
    %c0_33 = arith.constant 0 : index
    %c2 = arith.constant 2 : index
    %76 = vector.load %arg3[%c0_33, %c2] : memref<8x4xf32, #tpu.memory_space<vmem>>, vector<8x1xf32>
    %c2_34 = arith.constant 2 : index
    %c0_35 = arith.constant 0 : index
    %77 = vector.load %arg4[%c2_34, %c0_35] : memref<4x8xf32, #tpu.memory_space<vmem>>, vector<1x8xf32>
    %78 = vector.broadcast %76 : vector<8x1xf32> to vector<8x8xf32>
    %79 = vector.broadcast %77 : vector<1x8xf32> to vector<8x8xf32>
    %80 = arith.addf %78, %79 : vector<8x8xf32>
    %cst_36 = arith.constant 0.000000e+00 : f32
    %81 = vector.broadcast %cst_36 : f32 to vector<8x8xf32>
    %82 = arith.cmpf ogt, %80, %81 : vector<8x8xf32>
    %cst_37 = arith.constant 2.000000e-01 : f32
    %83 = vector.broadcast %cst_37 : f32 to vector<8x8xf32>
    %84 = arith.mulf %83, %80 : vector<8x8xf32>
    %85 = arith.select %82, %80, %84 : vector<8x8xi1>, vector<8x8xf32>
    %cst_38 = arith.constant -9.000000e+15 : f32
    %86 = vector.broadcast %cst_38 : f32 to vector<8x8xf32>
    %87 = arith.select %3, %85, %86 : vector<8x8xi1>, vector<8x8xf32>
    %cst_39 = arith.constant dense<0xFF800000> : vector<8xf32>
    %88 = vector.multi_reduction <maximumf>, %87, %cst_39 [1] : vector<8x8xf32> to vector<8xf32>
    %89 = vector.shape_cast %88 : vector<8xf32> to vector<8x1xf32>
    %90 = vector.broadcast %89 : vector<8x1xf32> to vector<8x8xf32>
    %91 = arith.subf %87, %90 : vector<8x8xf32>
    %92 = arith.truncf %91 : vector<8x8xf32> to vector<8x8xbf16>
    %93 = math.exp %92 : vector<8x8xbf16>
    %94 = arith.extf %93 : vector<8x8xbf16> to vector<8x8xf32>
    %cst_40 = arith.constant dense<0.000000e+00> : vector<8xf32>
    %95 = vector.multi_reduction <add>, %94, %cst_40 [1] : vector<8x8xf32> to vector<8xf32>
    %96 = vector.shape_cast %95 : vector<8xf32> to vector<8x1xf32>
    %c0_41 = arith.constant 0 : index
    %c16 = arith.constant 16 : index
    %97 = vector.load %arg1[%c0_41, %c16] : memref<8x32xbf16, #tpu.memory_space<vmem>>, vector<8x8xbf16>
    %cst_42 = arith.constant dense<0.000000e+00> : vector<8x8xf32>
    %98 = tpu.matmul %93, %97, %cst_42 {dimension_numbers = #tpu.dot_dimension_numbers<[1], [0], [0], [1], [0, 0, 1, 1], [], []>} : vector<8x8xbf16>, vector<8x8xbf16>, vector<8x8xf32> -> vector<8x8xf32>
    %99 = tpu.reciprocal %96 {approx = true} : vector<8x1xf32> -> vector<8x1xf32>
    %100 = vector.broadcast %99 : vector<8x1xf32> to vector<8x8xf32>
    %101 = arith.mulf %98, %100 : vector<8x8xf32>
    %cst_43 = arith.constant 0.000000e+00 : f32
    %102 = vector.broadcast %cst_43 : f32 to vector<8x8xf32>
    %103 = arith.cmpf ogt, %101, %102 : vector<8x8xf32>
    %cst_44 = arith.constant 0.000000e+00 : f32
    %104 = vector.broadcast %cst_44 : f32 to vector<8x8xf32>
    %105 = arith.minimumf %101, %104 : vector<8x8xf32>
    %106 = math.exp %105 : vector<8x8xf32>
    %cst_45 = arith.constant 1.000000e+00 : f32
    %107 = vector.broadcast %cst_45 : f32 to vector<8x8xf32>
    %108 = arith.subf %106, %107 : vector<8x8xf32>
    %109 = arith.select %103, %101, %108 : vector<8x8xi1>, vector<8x8xf32>
    %110 = arith.truncf %109 : vector<8x8xf32> to vector<8x8xbf16>
    %c0_46 = arith.constant 0 : index
    %c16_47 = arith.constant 16 : index
    %111 = vector.load %arg5[%c0_46, %c16_47] : memref<8x32xbf16, #tpu.memory_space<vmem>>, vector<8x8xbf16>
    tpu.vector_store %arg5[%c0_46, %c16_47], %110 {strides = array<i32>} : memref<8x32xbf16, #tpu.memory_space<vmem>>, vector<8x8xbf16>,
    %c0_48 = arith.constant 0 : index
    %c3 = arith.constant 3 : index
    %112 = vector.load %arg3[%c0_48, %c3] : memref<8x4xf32, #tpu.memory_space<vmem>>, vector<8x1xf32>
    %c3_49 = arith.constant 3 : index
    %c0_50 = arith.constant 0 : index
    %113 = vector.load %arg4[%c3_49, %c0_50] : memref<4x8xf32, #tpu.memory_space<vmem>>, vector<1x8xf32>
    %114 = vector.broadcast %112 : vector<8x1xf32> to vector<8x8xf32>
    %115 = vector.broadcast %113 : vector<1x8xf32> to vector<8x8xf32>
    %116 = arith.addf %114, %115 : vector<8x8xf32>
    %cst_51 = arith.constant 0.000000e+00 : f32
    %117 = vector.broadcast %cst_51 : f32 to vector<8x8xf32>
    %118 = arith.cmpf ogt, %116, %117 : vector<8x8xf32>
    %cst_52 = arith.constant 2.000000e-01 : f32
    %119 = vector.broadcast %cst_52 : f32 to vector<8x8xf32>
    %120 = arith.mulf %119, %116 : vector<8x8xf32>
    %121 = arith.select %118, %116, %120 : vector<8x8xi1>, vector<8x8xf32>
    %cst_53 = arith.constant -9.000000e+15 : f32
    %122 = vector.broadcast %cst_53 : f32 to vector<8x8xf32>
    %123 = arith.select %3, %121, %122 : vector<8x8xi1>, vector<8x8xf32>
    %cst_54 = arith.constant dense<0xFF800000> : vector<8xf32>
    %124 = vector.multi_reduction <maximumf>, %123, %cst_54 [1] : vector<8x8xf32> to vector<8xf32>
    %125 = vector.shape_cast %124 : vector<8xf32> to vector<8x1xf32>
    %126 = vector.broadcast %125 : vector<8x1xf32> to vector<8x8xf32>
    %127 = arith.subf %123, %126 : vector<8x8xf32>
    %128 = arith.truncf %127 : vector<8x8xf32> to vector<8x8xbf16>
    %129 = math.exp %128 : vector<8x8xbf16>
    %130 = arith.extf %129 : vector<8x8xbf16> to vector<8x8xf32>
    %cst_55 = arith.constant dense<0.000000e+00> : vector<8xf32>
    %131 = vector.multi_reduction <add>, %130, %cst_55 [1] : vector<8x8xf32> to vector<8xf32>
    %132 = vector.shape_cast %131 : vector<8xf32> to vector<8x1xf32>
    %c0_56 = arith.constant 0 : index
    %c24 = arith.constant 24 : index
    %133 = vector.load %arg1[%c0_56, %c24] : memref<8x32xbf16, #tpu.memory_space<vmem>>, vector<8x8xbf16>
    %cst_57 = arith.constant dense<0.000000e+00> : vector<8x8xf32>
    %134 = tpu.matmul %129, %133, %cst_57 {dimension_numbers = #tpu.dot_dimension_numbers<[1], [0], [0], [1], [0, 0, 1, 1], [], []>} : vector<8x8xbf16>, vector<8x8xbf16>, vector<8x8xf32> -> vector<8x8xf32>
    %135 = tpu.reciprocal %132 {approx = true} : vector<8x1xf32> -> vector<8x1xf32>
    %136 = vector.broadcast %135 : vector<8x1xf32> to vector<8x8xf32>
    %137 = arith.mulf %134, %136 : vector<8x8xf32>
    %cst_58 = arith.constant 0.000000e+00 : f32
    %138 = vector.broadcast %cst_58 : f32 to vector<8x8xf32>
    %139 = arith.cmpf ogt, %137, %138 : vector<8x8xf32>
    %cst_59 = arith.constant 0.000000e+00 : f32
    %140 = vector.broadcast %cst_59 : f32 to vector<8x8xf32>
    %141 = arith.minimumf %137, %140 : vector<8x8xf32>
    %142 = math.exp %141 : vector<8x8xf32>
    %cst_60 = arith.constant 1.000000e+00 : f32
    %143 = vector.broadcast %cst_60 : f32 to vector<8x8xf32>
    %144 = arith.subf %142, %143 : vector<8x8xf32>
    %145 = arith.select %139, %137, %144 : vector<8x8xi1>, vector<8x8xf32>
    %146 = arith.truncf %145 : vector<8x8xf32> to vector<8x8xbf16>
    %c0_61 = arith.constant 0 : index
    %c24_62 = arith.constant 24 : index
    %147 = vector.load %arg5[%c0_61, %c24_62] : memref<8x32xbf16, #tpu.memory_space<vmem>>, vector<8x8xbf16>
    tpu.vector_store %arg5[%c0_61, %c24_62], %146 {strides = array<i32>} : memref<8x32xbf16, #tpu.memory_space<vmem>>, vector<8x8xbf16>,
    return
  }
  func.func @transform_0(%arg0: i32) -> (i32, i32) {
    %c0_i32 = arith.constant 0 : i32
    %c0_i32_0 = arith.constant 0 : i32
    %c0_i32_1 = arith.constant 0 : i32
    return %c0_i32, %c0_i32_0 : i32, i32
  }
  func.func @transform_1(%arg0: i32) -> (i32, i32) {
    %c0_i32 = arith.constant 0 : i32
    %c0_i32_0 = arith.constant 0 : i32
    return %arg0, %c0_i32 : i32, i32
  }
  func.func @transform_2(%arg0: i32) -> (i32, i32) {
    %c0_i32 = arith.constant 0 : i32
    %c0_i32_0 = arith.constant 0 : i32
    return %arg0, %c0_i32 : i32, i32
  }
  func.func @transform_3(%arg0: i32) -> (i32, i32) {
    %c0_i32 = arith.constant 0 : i32
    %c0_i32_0 = arith.constant 0 : i32
    %c0_i32_1 = arith.constant 0 : i32
    return %c0_i32, %c0_i32_0 : i32, i32
  }
  func.func @transform_4(%arg0: i32) -> (i32, i32) {
    %c0_i32 = arith.constant 0 : i32
    %c0_i32_0 = arith.constant 0 : i32
    return %arg0, %c0_i32 : i32, i32
  }
}

module attributes {stable_mosaic.version = 11 : i64} {
  func.func @_attention_kernel(%arg0: i32, %arg1: memref<8x4xbf16, #tpu.memory_space<vmem>>, %arg2: memref<8x8xi8, #tpu.memory_space<vmem>>, %arg3: memref<8x1xf32, #tpu.memory_space<vmem>>, %arg4: memref<1x8xf32, #tpu.memory_space<vmem>>, %arg5: memref<8x4xf32, #tpu.memory_space<vmem>>) attributes {dimension_semantics = [#tpu.dimension_semantics<parallel>], iteration_bounds = array<i64: 1>, scalar_prefetch = 0 : i64, scratch_operands = 0 : i64, tpu.core_type = #tpu.core_type<tc>, window_params = [{pipeline_mode = #tpu.pipeline_mode<synchronous>, transform_indices = @transform_0, window_bounds = array<i64: 8, 4>}, {transform_indices = @transform_1, window_bounds = array<i64: 8, 8>}, {transform_indices = @transform_2, window_bounds = array<i64: 8, 1>}, {pipeline_mode = #tpu.pipeline_mode<synchronous>, transform_indices = @transform_3, window_bounds = array<i64: 1, 8>}, {transform_indices = @transform_4, window_bounds = array<i64: 8, 4>}]} {
    %c0 = arith.constant 0 : index
    %c0_0 = arith.constant 0 : index
    %0 = vector.load %arg2[%c0, %c0_0] : memref<8x8xi8, #tpu.memory_space<vmem>>, vector<8x8xi8>
    %1 = arith.sitofp %0 : vector<8x8xi8> to vector<8x8xf32>
    %cst = arith.constant 0.000000e+00 : f32
    %2 = vector.broadcast %cst : f32 to vector<8x8xf32>
    %3 = arith.cmpf ogt, %1, %2 : vector<8x8xf32>
    %c0_1 = arith.constant 0 : index
    %c0_2 = arith.constant 0 : index
    %4 = vector.load %arg3[%c0_1, %c0_2] : memref<8x1xf32, #tpu.memory_space<vmem>>, vector<8x1xf32>
    %c0_3 = arith.constant 0 : index
    %c0_4 = arith.constant 0 : index
    %5 = vector.load %arg4[%c0_3, %c0_4] : memref<1x8xf32, #tpu.memory_space<vmem>>, vector<1x8xf32>
    %6 = vector.broadcast %4 : vector<8x1xf32> to vector<8x8xf32>
    %7 = vector.broadcast %5 : vector<1x8xf32> to vector<8x8xf32>
    %8 = arith.addf %6, %7 : vector<8x8xf32>
    %cst_5 = arith.constant 0.000000e+00 : f32
    %9 = vector.broadcast %cst_5 : f32 to vector<8x8xf32>
    %10 = arith.cmpf ogt, %8, %9 : vector<8x8xf32>
    %cst_6 = arith.constant 2.000000e-01 : f32
    %11 = vector.broadcast %cst_6 : f32 to vector<8x8xf32>
    %12 = arith.mulf %11, %8 : vector<8x8xf32>
    %13 = arith.select %10, %8, %12 : vector<8x8xi1>, vector<8x8xf32>
    %cst_7 = arith.constant -9.000000e+15 : f32
    %14 = vector.broadcast %cst_7 : f32 to vector<8x8xf32>
    %15 = arith.select %3, %13, %14 : vector<8x8xi1>, vector<8x8xf32>
    %cst_8 = arith.constant dense<0xFF800000> : vector<8xf32>
    %16 = vector.multi_reduction <maximumf>, %15, %cst_8 [1] : vector<8x8xf32> to vector<8xf32>
    %17 = vector.shape_cast %16 : vector<8xf32> to vector<8x1xf32>
    %18 = vector.broadcast %17 : vector<8x1xf32> to vector<8x8xf32>
    %19 = arith.subf %15, %18 : vector<8x8xf32>
    %20 = arith.truncf %19 : vector<8x8xf32> to vector<8x8xbf16>
    %21 = math.exp %20 : vector<8x8xbf16>
    %22 = arith.extf %21 : vector<8x8xbf16> to vector<8x8xf32>
    %cst_9 = arith.constant dense<0.000000e+00> : vector<8xf32>
    %23 = vector.multi_reduction <add>, %22, %cst_9 [1] : vector<8x8xf32> to vector<8xf32>
    %24 = vector.shape_cast %23 : vector<8xf32> to vector<8x1xf32>
    %c0_10 = arith.constant 0 : index
    %c0_11 = arith.constant 0 : index
    %25 = vector.load %arg1[%c0_10, %c0_11] : memref<8x4xbf16, #tpu.memory_space<vmem>>, vector<8x4xbf16>
    %cst_12 = arith.constant dense<0.000000e+00> : vector<8x4xf32>
    %26 = tpu.matmul %21, %25, %cst_12 {dimension_numbers = #tpu.dot_dimension_numbers<[1], [0], [0], [1], [0, 0, 1, 1], [], []>} : vector<8x8xbf16>, vector<8x4xbf16>, vector<8x4xf32> -> vector<8x4xf32>
    %27 = tpu.reciprocal %24 {approx = true} : vector<8x1xf32> -> vector<8x1xf32>
    %28 = vector.broadcast %27 : vector<8x1xf32> to vector<8x4xf32>
    %29 = arith.mulf %26, %28 : vector<8x4xf32>
    %c0_13 = arith.constant 0 : index
    %c0_14 = arith.constant 0 : index
    %30 = vector.load %arg5[%c0_13, %c0_14] : memref<8x4xf32, #tpu.memory_space<vmem>>, vector<8x4xf32>
    tpu.vector_store %arg5[%c0_13, %c0_14], %29 {strides = array<i32>} : memref<8x4xf32, #tpu.memory_space<vmem>>, vector<8x4xf32>,
    return
  }
  func.func @transform_0(%arg0: i32) -> (i32, i32) {
    %c0_i32 = arith.constant 0 : i32
    %c0_i32_0 = arith.constant 0 : i32
    %c0_i32_1 = arith.constant 0 : i32
    return %c0_i32, %c0_i32_0 : i32, i32
  }
  func.func @transform_1(%arg0: i32) -> (i32, i32) {
    %c0_i32 = arith.constant 0 : i32
    %c0_i32_0 = arith.constant 0 : i32
    return %arg0, %c0_i32 : i32, i32
  }
  func.func @transform_2(%arg0: i32) -> (i32, i32) {
    %c0_i32 = arith.constant 0 : i32
    %c0_i32_0 = arith.constant 0 : i32
    return %arg0, %c0_i32 : i32, i32
  }
  func.func @transform_3(%arg0: i32) -> (i32, i32) {
    %c0_i32 = arith.constant 0 : i32
    %c0_i32_0 = arith.constant 0 : i32
    %c0_i32_1 = arith.constant 0 : i32
    return %c0_i32, %c0_i32_0 : i32, i32
  }
  func.func @transform_4(%arg0: i32) -> (i32, i32) {
    %c0_i32 = arith.constant 0 : i32
    %c0_i32_0 = arith.constant 0 : i32
    return %arg0, %c0_i32 : i32, i32
  }
}

</mosaic_0001>

<llo_original>
// kernel: gat_forward.4
$region0: #{gat_forward.4}
  #allocation0 [shape = 'u32[]', space=smem, size = 0x4, offset = 0x4, fixed_abs, tag = 'smem constant byte address 0x4 - core index']
  #allocation1 [shape = 'u32[144,128]{1,0:T(1,128)}', space=vmem, size = 0x12000, scoped, tag = 'internal scratch']
  %s0 = inlined_call_operand.vmem [shape: bf16[8,16], index: 0, kind: input, shape index: {}]
  %s1 = inlined_call_operand.vmem [shape: bf16[16,32], index: 1, kind: input, shape index: {}]
  %s2 = inlined_call_operand.vmem [shape: f32[32,8], index: 2, kind: input, shape index: {}]
  %s3 = inlined_call_operand.vmem [shape: bf16[8,32], index: 3, kind: output, shape index: {0}]
  %s4 = inlined_call_operand.vmem [shape: f32[8,8], index: 4, kind: output, shape index: {1}]
  %5 = xla_tuple %s3, %s4
  %s6 = sld [smem:[#allocation0]]
  $region30: #{gat_forward.4} parent=0
    _
  %s8 = ssub.s32 1, %s6
  %s9 = scalar_select 0, %s8, %s6
  // Predicated region
  $region2: #{gat_forward.4} parent=0 // pred_check
    _
  $region3: #{gat_forward.4} parent=0 // pred_check_branch
    %11 = sbr.rel (0) target = $region5
  $region4: #{gat_forward.4} parent=0 // pred_region
    _
  $region5: #{gat_forward.4} parent=0 // pred_fallthru
    _
  // Predicated region
  $region6: #{gat_forward.4} parent=0 // pred_check
    _
  $region7: #{gat_forward.4} parent=0 // pred_check_branch
    %13 = sbr.rel (0) target = $region9
  $region8: #{gat_forward.4} parent=0 // pred_region
    _
  $region9: #{gat_forward.4} parent=0 // pred_fallthru
    _
  // Predicated region
  $region10: #{gat_forward.4} parent=0 // pred_check
    _
  $region11: #{gat_forward.4} parent=0 // pred_check_branch
    %15 = sbr.rel (0) target = $region13
  $region12: #{gat_forward.4} parent=0 // pred_region
    _
  $region13: #{gat_forward.4} parent=0 // pred_fallthru
    _
  %v17 = vld [vmem:[%s0] sm:$0xf]
  %v18 = vld [vmem:[%s1] sm:$0xf]
  %v19 = vld [vmem:[%s1 + $0x4] sm:$0xf]
  %v22 = vunpack.c.l.b16 %v18
  %v23 = vunpack.c.l.b16 %v19
  %v24 = vpack.c.b16 %v23, %v22
  %vm26 = vcmask 130048
  %v28 = vsel %vm26, %v17, 0
  %30 = vmatprep.subr.bf16.mxu0 0
  %31 = vmatpush1.bf16.msra.mxu0 %v24
  %32 = vmatprep.subr.bf16.mxu0 0
  %33 = vmatpush1.bf16.msra.mxu0 0
  %34 = vmatprep.subr.bf16.mxu0 0
  %35 = vmatpush1.bf16.msra.mxu0 0
  %36 = vmatprep.subr.bf16.mxu0 0
  %37 = vmatpush1.bf16.msra.mxu0 0
  %38 = vmatprep.subr.bf16.mxu0 0
  %39 = vmatpush1.bf16.msra.mxu0 0
  %40 = vmatprep.subr.bf16.mxu0 0
  %41 = vmatpush1.bf16.msra.mxu0 0
  %42 = vmatprep.subr.bf16.mxu0 0
  %43 = vmatpush1.bf16.msra.mxu0 0
  %44 = vmatprep.subr.bf16.mxu0 0
  %45 = vmatpush1.bf16.msra.mxu0 0
  %46 = vmatprep.subr.bf16.mxu0 0
  %47 = vmatpush1.bf16.msra.mxu0 0
  %48 = vmatprep.subr.bf16.mxu0 0
  %49 = vmatpush1.bf16.msra.mxu0 0
  %50 = vmatprep.subr.bf16.mxu0 0
  %51 = vmatpush1.bf16.msra.mxu0 0
  %52 = vmatprep.subr.bf16.mxu0 0
  %53 = vmatpush1.bf16.msra.mxu0 0
  %54 = vmatprep.subr.bf16.mxu0 0
  %55 = vmatpush1.bf16.msra.mxu0 0
  %56 = vmatprep.subr.bf16.mxu0 0
  %57 = vmatpush1.bf16.msra.mxu0 0
  %58 = vmatprep.subr.bf16.mxu0 0
  %59 = vmatpush1.bf16.msra.mxu0 0
  %60 = vmatprep.subr.bf16.mxu0 0
  %61 = vmatpush1.bf16.msra.mxu0 0
  %62 = vmatprep.mubr.bf16.mxu0 0
  %63 = vmatmul.mubr.bf16.gmra.mrb[0].mxu0 %v28
  %v64 = vpop.f32.mrb[0].mxu0
  %v65 = vadd.f32 0.0, %v64
  %v66 = vpop.f32.mrb[0].mxu0
  %v67 = vpop.f32.mrb[0].mxu0
  %v68 = vpop.f32.mrb[0].mxu0
  %69 = vdwg.mxu0
  %v70 = vld [vmem:[%s2] sm:$0xff]
  %v71 = vld [vmem:[%s2 + $0x8] sm:$0xff]
  %v72 = vld [vmem:[%s2 + $0x10] sm:$0xff]
  %v73 = vld [vmem:[%s2 + $0x18] sm:$0xff]
  %vm74 = vcmask 261120
  %v76 = vsel %vm74, %v65, 0
  %78 = vmatprep.subr.mxu0 0.0
  %79 = vmatpush1.msra.mxu0 %v70
  %80 = vmatprep.subr.mxu0 0.0
  %81 = vmatpush1.msra.mxu0 %v71
  %82 = vmatprep.subr.mxu0 0.0
  %83 = vmatpush1.msra.mxu0 %v72
  %84 = vmatprep.subr.mxu0 0.0
  %85 = vmatpush1.msra.mxu0 %v73
  %86 = vmatprep.subr.mxu0 0.0
  %87 = vmatpush1.msra.mxu0 0.0
  %88 = vmatprep.subr.mxu0 0.0
  %89 = vmatpush1.msra.mxu0 0.0
  %90 = vmatprep.subr.mxu0 0.0
  %91 = vmatpush1.msra.mxu0 0.0
  %92 = vmatprep.subr.mxu0 0.0
  %93 = vmatpush1.msra.mxu0 0.0
  %94 = vmatprep.subr.mxu0 0.0
  %95 = vmatpush1.msra.mxu0 0.0
  %96 = vmatprep.subr.mxu0 0.0
  %97 = vmatpush1.msra.mxu0 0.0
  %98 = vmatprep.subr.mxu0 0.0
  %99 = vmatpush1.msra.mxu0 0.0
  %100 = vmatprep.subr.mxu0 0.0
  %101 = vmatpush1.msra.mxu0 0.0
  %102 = vmatprep.subr.mxu0 0.0
  %103 = vmatpush1.msra.mxu0 0.0
  %104 = vmatprep.subr.mxu0 0.0
  %105 = vmatpush1.msra.mxu0 0.0
  %106 = vmatprep.subr.mxu0 0.0
  %107 = vmatpush1.msra.mxu0 0.0
  %108 = vmatprep.subr.mxu0 0.0
  %109 = vmatpush1.msra.mxu0 0.0
  %110 = vmatprep.subr.mxu0 0.0
  %111 = vmatpush1.msra.mxu0 0.0
  %112 = vmatprep.subr.mxu0 0.0
  %113 = vmatpush1.msra.mxu0 0.0
  %114 = vmatprep.subr.mxu0 0.0
  %115 = vmatpush1.msra.mxu0 0.0
  %116 = vmatprep.subr.mxu0 0.0
  %117 = vmatpush1.msra.mxu0 0.0
  %118 = vmatprep.subr.mxu0 0.0
  %119 = vmatpush1.msra.mxu0 0.0
  %120 = vmatprep.subr.mxu0 0.0
  %121 = vmatpush1.msra.mxu0 0.0
  %122 = vmatprep.subr.mxu0 0.0
  %123 = vmatpush1.msra.mxu0 0.0
  %124 = vmatprep.subr.mxu0 0.0
  %125 = vmatpush1.msra.mxu0 0.0
  %126 = vmatprep.subr.mxu0 0.0
  %127 = vmatpush1.msra.mxu0 0.0
  %128 = vmatprep.subr.mxu0 0.0
  %129 = vmatpush1.msra.mxu0 0.0
  %130 = vmatprep.subr.mxu0 0.0
  %131 = vmatpush1.msra.mxu0 0.0
  %132 = vmatprep.subr.mxu0 0.0
  %133 = vmatpush1.msra.mxu0 0.0
  %134 = vmatprep.subr.mxu0 0.0
  %135 = vmatpush1.msra.mxu0 0.0
  %136 = vmatprep.subr.mxu0 0.0
  %137 = vmatpush1.msra.mxu0 0.0
  %138 = vmatprep.subr.mxu0 0.0
  %139 = vmatpush1.msra.mxu0 0.0
  %140 = vmatprep.subr.mxu0 0.0
  %141 = vmatpush1.msra.mxu0 0.0
  %142 = vmatprep.mubr.f32.mxu0 0.0
  %143 = vmatmul.mubr.f32.gmra.mrb[0].mxu0 %v76
  %v144 = vpop.f32.mrb[0].mxu0
  %v145 = vadd.f32 0.0, %v144
  %v146 = vpop.f32.mrb[0].mxu0
  %147 = vdwg.mxu0
  %vm148 = vcmask 64512
  %149 = vst.msk [vmem:[%s4] sm:$0xff] %vm148, %v145
  %v150 = vpack.c.bf16 %v65, %v65
  %vm151 = vcmask 257024
  %152 = vst.msk [vmem:[%s3] sm:$0xf] %vm151, %v150
  // Predicated region
  $region14: #{gat_forward.4} parent=0 // pred_check
    _
  $region15: #{gat_forward.4} parent=0 // pred_check_branch
    %154 = sbr.rel (0) target = $region17
  $region16: #{gat_forward.4} parent=0 // pred_region
    _
  $region17: #{gat_forward.4} parent=0 // pred_fallthru
    _
  // Predicated region
  $region18: #{gat_forward.4} parent=0 // pred_check
    _
  $region19: #{gat_forward.4} parent=0 // pred_check_branch
    %156 = sbr.rel (0) target = $region21
  $region20: #{gat_forward.4} parent=0 // pred_region
    _
  $region21: #{gat_forward.4} parent=0 // pred_fallthru
    _
  // Predicated region
  $region22: #{gat_forward.4} parent=0 // pred_check
    _
  $region23: #{gat_forward.4} parent=0 // pred_check_branch
    %158 = sbr.rel (0) target = $region25
  $region24: #{gat_forward.4} parent=0 // pred_region
    _
  $region25: #{gat_forward.4} parent=0 // pred_fallthru
    _
  // Predicated region
  $region26: #{gat_forward.4} parent=0 // pred_check
    _
  $region27: #{gat_forward.4} parent=0 // pred_check_branch
    %160 = sbr.rel (0) target = $region29
  $region28: #{gat_forward.4} parent=0 // pred_region
    _
  $region29: #{gat_forward.4} parent=0 // pred_fallthru
    _

// kernel: gat_forward.6
$region0: #{gat_forward.6}
  #allocation0 [shape = 'u32[]', space=smem, size = 0x4, offset = 0x4, fixed_abs, tag = 'smem constant byte address 0x4 - core index']
  #allocation1 [shape = 'u32[144,128]{1,0:T(1,128)}', space=vmem, size = 0x12000, scoped, tag = 'internal scratch']
  %s0 = inlined_call_operand.vmem [shape: bf16[8,32], index: 0, kind: input, shape index: {}]
  %s1 = inlined_call_operand.vmem [shape: bf16[32,4], index: 1, kind: input, shape index: {}]
  %s2 = inlined_call_operand.vmem [shape: f32[4,2], index: 2, kind: input, shape index: {}]
  %s3 = inlined_call_operand.vmem [shape: bf16[8,4], index: 3, kind: output, shape index: {0}]
  %s4 = inlined_call_operand.vmem [shape: f32[8,2], index: 4, kind: output, shape index: {1}]
  %5 = xla_tuple %s3, %s4
  %s6 = sld [smem:[#allocation0]]
  $region30: #{gat_forward.6} parent=0
    _
  %s8 = ssub.s32 1, %s6
  %s9 = scalar_select 0, %s8, %s6
  // Predicated region
  $region2: #{gat_forward.6} parent=0 // pred_check
    _
  $region3: #{gat_forward.6} parent=0 // pred_check_branch
    %11 = sbr.rel (0) target = $region5
  $region4: #{gat_forward.6} parent=0 // pred_region
    _
  $region5: #{gat_forward.6} parent=0 // pred_fallthru
    _
  // Predicated region
  $region6: #{gat_forward.6} parent=0 // pred_check
    _
  $region7: #{gat_forward.6} parent=0 // pred_check_branch
    %13 = sbr.rel (0) target = $region9
  $region8: #{gat_forward.6} parent=0 // pred_region
    _
  $region9: #{gat_forward.6} parent=0 // pred_fallthru
    _
  // Predicated region
  $region10: #{gat_forward.6} parent=0 // pred_check
    _
  $region11: #{gat_forward.6} parent=0 // pred_check_branch
    %15 = sbr.rel (0) target = $region13
  $region12: #{gat_forward.6} parent=0 // pred_region
    _
  $region13: #{gat_forward.6} parent=0 // pred_fallthru
    _
  %v17 = vld [vmem:[%s0] sm:$0xf]
  %v18 = vld [vmem:[%s1] sm:$0xf]
  %v19 = vld [vmem:[%s1 + $0x4] sm:$0xf]
  %v20 = vld [vmem:[%s1 + $0x8] sm:$0xf]
  %v21 = vld [vmem:[%s1 + $0xc] sm:$0xf]
  %v26 = vunpack.c.l.b16 %v18
  %v27 = vunpack.c.l.b16 %v19
  %v28 = vunpack.c.l.b16 %v20
  %v29 = vunpack.c.l.b16 %v21
  %v30 = vpack.c.b16 %v27, %v26
  %v31 = vpack.c.b16 %v29, %v28
  %vm34 = vcmask 261120
  %v36 = vsel %vm34, %v17, 0
  %38 = vmatprep.subr.bf16.mxu0 0
  %39 = vmatpush1.bf16.msra.mxu0 %v30
  %40 = vmatprep.subr.bf16.mxu0 0
  %41 = vmatpush1.bf16.msra.mxu0 %v31
  %42 = vmatprep.subr.bf16.mxu0 0
  %43 = vmatpush1.bf16.msra.mxu0 0
  %44 = vmatprep.subr.bf16.mxu0 0
  %45 = vmatpush1.bf16.msra.mxu0 0
  %46 = vmatprep.subr.bf16.mxu0 0
  %47 = vmatpush1.bf16.msra.mxu0 0
  %48 = vmatprep.subr.bf16.mxu0 0
  %49 = vmatpush1.bf16.msra.mxu0 0
  %50 = vmatprep.subr.bf16.mxu0 0
  %51 = vmatpush1.bf16.msra.mxu0 0
  %52 = vmatprep.subr.bf16.mxu0 0
  %53 = vmatpush1.bf16.msra.mxu0 0
  %54 = vmatprep.subr.bf16.mxu0 0
  %55 = vmatpush1.bf16.msra.mxu0 0
  %56 = vmatprep.subr.bf16.mxu0 0
  %57 = vmatpush1.bf16.msra.mxu0 0
  %58 = vmatprep.subr.bf16.mxu0 0
  %59 = vmatpush1.bf16.msra.mxu0 0
  %60 = vmatprep.subr.bf16.mxu0 0
  %61 = vmatpush1.bf16.msra.mxu0 0
  %62 = vmatprep.subr.bf16.mxu0 0
  %63 = vmatpush1.bf16.msra.mxu0 0
  %64 = vmatprep.subr.bf16.mxu0 0
  %65 = vmatpush1.bf16.msra.mxu0 0
  %66 = vmatprep.subr.bf16.mxu0 0
  %67 = vmatpush1.bf16.msra.mxu0 0
  %68 = vmatprep.subr.bf16.mxu0 0
  %69 = vmatpush1.bf16.msra.mxu0 0
  %70 = vmatprep.mubr.bf16.mxu0 0
  %71 = vmatmul.mubr.bf16.gmra.mrb[0].mxu0 %v36
  %v72 = vpop.f32.mrb[0].mxu0
  %v73 = vadd.f32 0.0, %v72
  %v74 = vpop.f32.mrb[0].mxu0
  %v75 = vpop.f32.mrb[0].mxu0
  %v76 = vpop.f32.mrb[0].mxu0
  %77 = vdwg.mxu0
  %v78 = vld [vmem:[%s2] sm:$0xf]
  %vm79 = vcmask 31744
  %v81 = vsel %vm79, %v73, 0
  %vm83 = vcmask 1043456
  %v85 = vsel %vm83, %v78, 0
  %87 = vmatprep.subr.mxu0 0.0
  %88 = vmatpush1.msra.mxu0 %v85
  %89 = vmatprep.subr.mxu0 0.0
  %90 = vmatpush1.msra.mxu0 0.0
  %91 = vmatprep.subr.mxu0 0.0
  %92 = vmatpush1.msra.mxu0 0.0
  %93 = vmatprep.subr.mxu0 0.0
  %94 = vmatpush1.msra.mxu0 0.0
  %95 = vmatprep.subr.mxu0 0.0
  %96 = vmatpush1.msra.mxu0 0.0
  %97 = vmatprep.subr.mxu0 0.0
  %98 = vmatpush1.msra.mxu0 0.0
  %99 = vmatprep.subr.mxu0 0.0
  %100 = vmatpush1.msra.mxu0 0.0
  %101 = vmatprep.subr.mxu0 0.0
  %102 = vmatpush1.msra.mxu0 0.0
  %103 = vmatprep.subr.mxu0 0.0
  %104 = vmatpush1.msra.mxu0 0.0
  %105 = vmatprep.subr.mxu0 0.0
  %106 = vmatpush1.msra.mxu0 0.0
  %107 = vmatprep.subr.mxu0 0.0
  %108 = vmatpush1.msra.mxu0 0.0
  %109 = vmatprep.subr.mxu0 0.0
  %110 = vmatpush1.msra.mxu0 0.0
  %111 = vmatprep.subr.mxu0 0.0
  %112 = vmatpush1.msra.mxu0 0.0
  %113 = vmatprep.subr.mxu0 0.0
  %114 = vmatpush1.msra.mxu0 0.0
  %115 = vmatprep.subr.mxu0 0.0
  %116 = vmatpush1.msra.mxu0 0.0
  %117 = vmatprep.subr.mxu0 0.0
  %118 = vmatpush1.msra.mxu0 0.0
  %119 = vmatprep.subr.mxu0 0.0
  %120 = vmatpush1.msra.mxu0 0.0
  %121 = vmatprep.subr.mxu0 0.0
  %122 = vmatpush1.msra.mxu0 0.0
  %123 = vmatprep.subr.mxu0 0.0
  %124 = vmatpush1.msra.mxu0 0.0
  %125 = vmatprep.subr.mxu0 0.0
  %126 = vmatpush1.msra.mxu0 0.0
  %127 = vmatprep.subr.mxu0 0.0
  %128 = vmatpush1.msra.mxu0 0.0
  %129 = vmatprep.subr.mxu0 0.0
  %130 = vmatpush1.msra.mxu0 0.0
  %131 = vmatprep.subr.mxu0 0.0
  %132 = vmatpush1.msra.mxu0 0.0
  %133 = vmatprep.subr.mxu0 0.0
  %134 = vmatpush1.msra.mxu0 0.0
  %135 = vmatprep.subr.mxu0 0.0
  %136 = vmatpush1.msra.mxu0 0.0
  %137 = vmatprep.subr.mxu0 0.0
  %138 = vmatpush1.msra.mxu0 0.0
  %139 = vmatprep.subr.mxu0 0.0
  %140 = vmatpush1.msra.mxu0 0.0
  %141 = vmatprep.subr.mxu0 0.0
  %142 = vmatpush1.msra.mxu0 0.0
  %143 = vmatprep.subr.mxu0 0.0
  %144 = vmatpush1.msra.mxu0 0.0
  %145 = vmatprep.subr.mxu0 0.0
  %146 = vmatpush1.msra.mxu0 0.0
  %147 = vmatprep.subr.mxu0 0.0
  %148 = vmatpush1.msra.mxu0 0.0
  %149 = vmatprep.subr.mxu0 0.0
  %150 = vmatpush1.msra.mxu0 0.0
  %151 = vmatprep.mubr.f32.mxu0 0.0
  %152 = vmatmul.mubr.f32.gmra.mrb[0].mxu0 %v81
  %v153 = vpop.f32.mrb[0].mxu0
  %v154 = vadd.f32 0.0, %v153
  %v155 = vpop.f32.mrb[0].mxu0
  %156 = vdwg.mxu0
  %vm157 = vcmask 15360
  %158 = vst.msk [vmem:[%s4] sm:$0xff] %vm157, %v154
  %v159 = vpack.c.bf16 %v73, %v73
  %vm160 = vcmask 27648
  %161 = vst.msk [vmem:[%s3] sm:$0xf] %vm160, %v159
  // Predicated region
  $region14: #{gat_forward.6} parent=0 // pred_check
    _
  $region15: #{gat_forward.6} parent=0 // pred_check_branch
    %163 = sbr.rel (0) target = $region17
  $region16: #{gat_forward.6} parent=0 // pred_region
    _
  $region17: #{gat_forward.6} parent=0 // pred_fallthru
    _
  // Predicated region
  $region18: #{gat_forward.6} parent=0 // pred_check
    _
  $region19: #{gat_forward.6} parent=0 // pred_check_branch
    %165 = sbr.rel (0) target = $region21
  $region20: #{gat_forward.6} parent=0 // pred_region
    _
  $region21: #{gat_forward.6} parent=0 // pred_fallthru
    _
  // Predicated region
  $region22: #{gat_forward.6} parent=0 // pred_check
    _
  $region23: #{gat_forward.6} parent=0 // pred_check_branch
    %167 = sbr.rel (0) target = $region25
  $region24: #{gat_forward.6} parent=0 // pred_region
    _
  $region25: #{gat_forward.6} parent=0 // pred_fallthru
    _
  // Predicated region
  $region26: #{gat_forward.6} parent=0 // pred_check
    _
  $region27: #{gat_forward.6} parent=0 // pred_check_branch
    %169 = sbr.rel (0) target = $region29
  $region28: #{gat_forward.6} parent=0 // pred_region
    _
  $region29: #{gat_forward.6} parent=0 // pred_fallthru
    _

// kernel: gat_forward.7
$region0: #{gat_forward.7}
  #allocation0 [shape = 'u32[]', space=smem, size = 0x4, offset = 0x4, fixed_abs, tag = 'smem constant byte address 0x4 - core index']
  #allocation1 [shape = 'u32[144,128]{1,0:T(1,128)}', space=vmem, size = 0x12000, scoped, tag = 'internal scratch']
  %s0 = inlined_call_operand.vmem [shape: bf16[8,4], index: 0, kind: input, shape index: {}]
  %s1 = inlined_call_operand.vmem [shape: s8[8,8], index: 1, kind: input, shape index: {}]
  %s2 = inlined_call_operand.vmem [shape: f32[8,1], index: 2, kind: input, shape index: {}]
  %s3 = inlined_call_operand.vmem [shape: f32[1,8], index: 3, kind: input, shape index: {}]
  %s4 = inlined_call_operand.vmem [shape: f32[8,4], index: 4, kind: output, shape index: {}]
  %s5 = sld [smem:[#allocation0]]
  $region26: #{gat_forward.7} parent=0
    _
  %s7 = ssub.s32 1, %s5
  %s8 = scalar_select 0, %s7, %s5
  // Predicated region
  $region2: #{gat_forward.7} parent=0 // pred_check
    _
  $region3: #{gat_forward.7} parent=0 // pred_check_branch
    %10 = sbr.rel (0) target = $region5
  $region4: #{gat_forward.7} parent=0 // pred_region
    _
  $region5: #{gat_forward.7} parent=0 // pred_fallthru
    _
  // Predicated region
  $region6: #{gat_forward.7} parent=0 // pred_check
    _
  $region7: #{gat_forward.7} parent=0 // pred_check_branch
    %12 = sbr.rel (0) target = $region9
  $region8: #{gat_forward.7} parent=0 // pred_region
    _
  $region9: #{gat_forward.7} parent=0 // pred_fallthru
    _
  // Predicated region
  $region10: #{gat_forward.7} parent=0 // pred_check
    _
  $region11: #{gat_forward.7} parent=0 // pred_check_branch
    %14 = sbr.rel (0) target = $region13
  $region12: #{gat_forward.7} parent=0 // pred_region
    _
  $region13: #{gat_forward.7} parent=0 // pred_fallthru
    _
  // Predicated region
  $region14: #{gat_forward.7} parent=0 // pred_check
    _
  $region15: #{gat_forward.7} parent=0 // pred_check_branch
    %16 = sbr.rel (0) target = $region17
  $region16: #{gat_forward.7} parent=0 // pred_region
    _
  $region17: #{gat_forward.7} parent=0 // pred_fallthru
    _
  %v18 = vld [vmem:[%s1] sm:$0x3]
  %v19 = vunpack.c.0.s8 %v18
  %v20 = vcvt.s32.f32 %v19
  %vm21 = vcmp.gt.f32.partialorder %v20, 0.0
  %v22 = vld [vmem:[%s2] sm:$0xff]
  %v23 = vld [vmem:[%s3] sm:$0x1]
  %25 = vset.pattern.permute.xlu0 0
  %26 = vperm.xlu0 %25, %v22
  %v27 = vpop.permute.xlu0 %26
  %v30 = vlaneseq
  %v31 = vshrl.u32 %v30, 7
  %v32 = vsub.s32 0, %v31
  %v33 = vrot.slane %v23, %v32
  %v35 = vadd.f32 %v27, %v33
  %vm36 = vcmp.gt.f32.partialorder %v35, 0.0
  %v37 = vmul.f32 %v35, 0.2
  %v38 = vsel %vm36, %v35, %v37
  %v39 = vsel %vm21, %v38, -9e+15
  %vm40 = vcmask 64512
  %v41 = vsel %vm40, %v39, -inf
  %42 = vmax.xlane.f32.xlu0 %v41
  %v43 = vpop.xlane.xlu0 %42
  %v44 = vsub.f32 %v39, %v43
  %v45 = vpack.c.bf16 %v44, %v44
  %v47 = vmul.bf16 %v45, 1069105081
  %v48 = vpow.bf16.pop %v47
  %v49 = vunpack.c.l.bf16 %v48
  %v50 = vsel %vm40, %v49, 0.0
  %51 = vadd.xlane.f32.xlu0 %v50
  %v52 = vpop.xlane.xlu0 %51
  %v53 = vld [vmem:[%s0] sm:$0xf]
  %v55 = vsel %vm40, %v48, 0
  %vm57 = vcmask 1043456
  %v59 = vsel %vm57, %v53, 0
  %61 = vmatprep.subr.bf16.mxu0 0
  %62 = vmatpush1.bf16.msra.mxu0 %v59
  %63 = vmatprep.subr.bf16.mxu0 0
  %64 = vmatpush1.bf16.msra.mxu0 0
  %65 = vmatprep.subr.bf16.mxu0 0
  %66 = vmatpush1.bf16.msra.mxu0 0
  %67 = vmatprep.subr.bf16.mxu0 0
  %68 = vmatpush1.bf16.msra.mxu0 0
  %69 = vmatprep.subr.bf16.mxu0 0
  %70 = vmatpush1.bf16.msra.mxu0 0
  %71 = vmatprep.subr.bf16.mxu0 0
  %72 = vmatpush1.bf16.msra.mxu0 0
  %73 = vmatprep.subr.bf16.mxu0 0
  %74 = vmatpush1.bf16.msra.mxu0 0
  %75 = vmatprep.subr.bf16.mxu0 0
  %76 = vmatpush1.bf16.msra.mxu0 0
  %77 = vmatprep.subr.bf16.mxu0 0
  %78 = vmatpush1.bf16.msra.mxu0 0
  %79 = vmatprep.subr.bf16.mxu0 0
  %80 = vmatpush1.bf16.msra.mxu0 0
  %81 = vmatprep.subr.bf16.mxu0 0
  %82 = vmatpush1.bf16.msra.mxu0 0
  %83 = vmatprep.subr.bf16.mxu0 0
  %84 = vmatpush1.bf16.msra.mxu0 0
  %85 = vmatprep.subr.bf16.mxu0 0
  %86 = vmatpush1.bf16.msra.mxu0 0
  %87 = vmatprep.subr.bf16.mxu0 0
  %88 = vmatpush1.bf16.msra.mxu0 0
  %89 = vmatprep.subr.bf16.mxu0 0
  %90 = vmatpush1.bf16.msra.mxu0 0
  %91 = vmatprep.subr.bf16.mxu0 0
  %92 = vmatpush1.bf16.msra.mxu0 0
  %93 = vmatprep.mubr.bf16.mxu0 0
  %94 = vmatmul.mubr.bf16.gmra.mrb[0].mxu0 %v55
  %v95 = vpop.f32.mrb[0].mxu0
  %v96 = vadd.f32 0.0, %v95
  %v97 = vpop.f32.mrb[0].mxu0
  %v98 = vpop.f32.mrb[0].mxu0
  %v99 = vpop.f32.mrb[0].mxu0
  %100 = vdwg.mxu0
  %v101 = vrcp.pop %v52
  %v102 = vmul.f32 %v96, %v101
  %vm103 = vcmask 31744
  %104 = vst.msk [vmem:[%s4] sm:$0xff] %vm103, %v102
  // Predicated region
  $region18: #{gat_forward.7} parent=0 // pred_check
    _
  $region19: #{gat_forward.7} parent=0 // pred_check_branch
    %106 = sbr.rel (0) target = $region21
  $region20: #{gat_forward.7} parent=0 // pred_region
    _
  $region21: #{gat_forward.7} parent=0 // pred_fallthru
    _
  // Predicated region
  $region22: #{gat_forward.7} parent=0 // pred_check
    _
  $region23: #{gat_forward.7} parent=0 // pred_check_branch
    %108 = sbr.rel (0) target = $region25
  $region24: #{gat_forward.7} parent=0 // pred_region
    _
  $region25: #{gat_forward.7} parent=0 // pred_fallthru
    _

// kernel: gat_forward.5
$region0: #{gat_forward.5}
  #allocation0 [shape = 'u32[]', space=smem, size = 0x4, offset = 0x4, fixed_abs, tag = 'smem constant byte address 0x4 - core index']
  #allocation1 [shape = 'u32[144,128]{1,0:T(1,128)}', space=vmem, size = 0x12000, scoped, tag = 'internal scratch']
  %s0 = inlined_call_operand.vmem [shape: bf16[8,32], index: 0, kind: input, shape index: {}]
  %s1 = inlined_call_operand.vmem [shape: s8[8,8], index: 1, kind: input, shape index: {}]
  %s2 = inlined_call_operand.vmem [shape: f32[8,4], index: 2, kind: input, shape index: {}]
  %s3 = inlined_call_operand.vmem [shape: f32[4,8], index: 3, kind: input, shape index: {}]
  %s4 = inlined_call_operand.vmem [shape: bf16[8,32], index: 4, kind: output, shape index: {}]
  %s5 = sld [smem:[#allocation0]]
  $region26: #{gat_forward.5} parent=0
    _
  %s7 = ssub.s32 1, %s5
  %s8 = scalar_select 0, %s7, %s5
  // Predicated region
  $region2: #{gat_forward.5} parent=0 // pred_check
    _
  $region3: #{gat_forward.5} parent=0 // pred_check_branch
    %10 = sbr.rel (0) target = $region5
  $region4: #{gat_forward.5} parent=0 // pred_region
    _
  $region5: #{gat_forward.5} parent=0 // pred_fallthru
    _
  // Predicated region
  $region6: #{gat_forward.5} parent=0 // pred_check
    _
  $region7: #{gat_forward.5} parent=0 // pred_check_branch
    %12 = sbr.rel (0) target = $region9
  $region8: #{gat_forward.5} parent=0 // pred_region
    _
  $region9: #{gat_forward.5} parent=0 // pred_fallthru
    _
  // Predicated region
  $region10: #{gat_forward.5} parent=0 // pred_check
    _
  $region11: #{gat_forward.5} parent=0 // pred_check_branch
    %14 = sbr.rel (0) target = $region13
  $region12: #{gat_forward.5} parent=0 // pred_region
    _
  $region13: #{gat_forward.5} parent=0 // pred_fallthru
    _
  // Predicated region
  $region14: #{gat_forward.5} parent=0 // pred_check
    _
  $region15: #{gat_forward.5} parent=0 // pred_check_branch
    %16 = sbr.rel (0) target = $region17
  $region16: #{gat_forward.5} parent=0 // pred_region
    _
  $region17: #{gat_forward.5} parent=0 // pred_fallthru
    _
  %v18 = vld [vmem:[%s1] sm:$0x3]
  %v19 = vunpack.c.0.s8 %v18
  %v20 = vcvt.s32.f32 %v19
  %vm21 = vcmp.gt.f32.partialorder %v20, 0.0
  %v22 = vld [vmem:[%s2] sm:$0xff]
  %v23 = vld [vmem:[%s3] sm:$0x1]
  %25 = vset.pattern.permute.xlu0 0
  %26 = vperm.xlu0 %25, %v22
  %v27 = vpop.permute.xlu0 %26
  %v29 = vlaneseq
  %v30 = vshrl.u32 %v29, 7
  %v31 = vsub.s32 0, %v30
  %v32 = vrot.slane %v23, %v31
  %v33 = vadd.f32 %v27, %v32
  %vm34 = vcmp.gt.f32.partialorder %v33, 0.0
  %v35 = vmul.f32 %v33, 0.2
  %v36 = vsel %vm34, %v33, %v35
  %v37 = vsel %vm21, %v36, -9e+15
  %vm38 = vcmask 64512
  %v39 = vsel %vm38, %v37, -inf
  %40 = vmax.xlane.f32.xlu0 %v39
  %v41 = vpop.xlane.xlu0 %40
  %v42 = vsub.f32 %v37, %v41
  %v43 = vpack.c.bf16 %v42, %v42
  %v45 = vmul.bf16 %v43, 1069105081
  %v46 = vpow.bf16.pop %v45
  %v47 = vunpack.c.l.bf16 %v46
  %v48 = vsel %vm38, %v47, 0.0
  %49 = vadd.xlane.f32.xlu0 %v48
  %v50 = vpop.xlane.xlu0 %49
  %v51 = vld [vmem:[%s0] sm:$0xf]
  %v53 = vsel %vm38, %v46, 0
  %vm55 = vcmask 1043456
  %v57 = vsel %vm55, %v51, 0
  %59 = vmatprep.subr.bf16.mxu0 0
  %60 = vmatpush1.bf16.msra.mxu0 %v57
  %61 = vmatprep.subr.bf16.mxu0 0
  %62 = vmatpush1.bf16.msra.mxu0 0
  %63 = vmatprep.subr.bf16.mxu0 0
  %64 = vmatpush1.bf16.msra.mxu0 0
  %65 = vmatprep.subr.bf16.mxu0 0
  %66 = vmatpush1.bf16.msra.mxu0 0
  %67 = vmatprep.subr.bf16.mxu0 0
  %68 = vmatpush1.bf16.msra.mxu0 0
  %69 = vmatprep.subr.bf16.mxu0 0
  %70 = vmatpush1.bf16.msra.mxu0 0
  %71 = vmatprep.subr.bf16.mxu0 0
  %72 = vmatpush1.bf16.msra.mxu0 0
  %73 = vmatprep.subr.bf16.mxu0 0
  %74 = vmatpush1.bf16.msra.mxu0 0
  %75 = vmatprep.subr.bf16.mxu0 0
  %76 = vmatpush1.bf16.msra.mxu0 0
  %77 = vmatprep.subr.bf16.mxu0 0
  %78 = vmatpush1.bf16.msra.mxu0 0
  %79 = vmatprep.subr.bf16.mxu0 0
  %80 = vmatpush1.bf16.msra.mxu0 0
  %81 = vmatprep.subr.bf16.mxu0 0
  %82 = vmatpush1.bf16.msra.mxu0 0
  %83 = vmatprep.subr.bf16.mxu0 0
  %84 = vmatpush1.bf16.msra.mxu0 0
  %85 = vmatprep.subr.bf16.mxu0 0
  %86 = vmatpush1.bf16.msra.mxu0 0
  %87 = vmatprep.subr.bf16.mxu0 0
  %88 = vmatpush1.bf16.msra.mxu0 0
  %89 = vmatprep.subr.bf16.mxu0 0
  %90 = vmatpush1.bf16.msra.mxu0 0
  %91 = vmatprep.mubr.bf16.mxu0 0
  %92 = vmatmul.mubr.bf16.gmra.mrb[0].mxu0 %v53
  %v93 = vpop.f32.mrb[0].mxu0
  %v94 = vadd.f32 0.0, %v93
  %v95 = vpop.f32.mrb[0].mxu0
  %v96 = vpop.f32.mrb[0].mxu0
  %v97 = vpop.f32.mrb[0].mxu0
  %98 = vdwg.mxu0
  %v99 = vrcp.pop %v50
  %v100 = vmul.f32 %v94, %v99
  %vm101 = vcmp.gt.f32.partialorder %v100, 0.0
  %v102 = vmin.f32 %v100, 0.0
  %v103 = vmul.f32 %v102, 1.442695
  %v104 = vpow.pop %v103
  %v105 = vsub.f32 %v104, 1.0
  %v106 = vsel %vm101, %v100, %v105
  %v107 = vpack.c.bf16 %v106, %v106
  %vm108 = vcmask 60416
  %109 = vst.msk [vmem:[%s4] sm:$0xf] %vm108, %v107
  %v110 = vld [vmem:[%s2] sm:$0xff]
  %v111 = vld [vmem:[%s3 + $0x1] sm:$0x1]
  %113 = vset.pattern.permute.xlu0 1
  %114 = vperm.xlu0 %113, %v110
  %v115 = vpop.permute.xlu0 %114
  %v117 = vlaneseq
  %v118 = vshrl.u32 %v117, 7
  %v119 = vsub.s32 0, %v118
  %v120 = vrot.slane %v111, %v119
  %v121 = vadd.f32 %v115, %v120
  %vm122 = vcmp.gt.f32.partialorder %v121, 0.0
  %v123 = vmul.f32 %v121, 0.2
  %v124 = vsel %vm122, %v121, %v123
  %v125 = vsel %vm21, %v124, -9e+15
  %v126 = vsel %vm38, %v125, -inf
  %127 = vmax.xlane.f32.xlu0 %v126
  %v128 = vpop.xlane.xlu0 %127
  %v129 = vsub.f32 %v125, %v128
  %v130 = vpack.c.bf16 %v129, %v129
  %v132 = vmul.bf16 %v130, 1069105081
  %v133 = vpow.bf16.pop %v132
  %v134 = vunpack.c.l.bf16 %v133
  %v135 = vsel %vm38, %v134, 0.0
  %136 = vadd.xlane.f32.xlu0 %v135
  %v137 = vpop.xlane.xlu0 %136
  %v138 = vld [vmem:[%s0] sm:$0xf]
  %v140 = vunpack.c.l.b16 %v138
  %v141 = vpack.c.b16 %v140, %v140
  %142 = vrot.lane.b32.xlu0 %v141, 120
  %v143 = vpop.permute.xlu0 %142
  %v145 = vsel %vm38, %v133, 0
  %v148 = vsel %vm55, %v143, 0
  %150 = vmatprep.subr.bf16.mxu0 0
  %151 = vmatpush1.bf16.msra.mxu0 %v148
  %152 = vmatprep.subr.bf16.mxu0 0
  %153 = vmatpush1.bf16.msra.mxu0 0
  %154 = vmatprep.subr.bf16.mxu0 0
  %155 = vmatpush1.bf16.msra.mxu0 0
  %156 = vmatprep.subr.bf16.mxu0 0
  %157 = vmatpush1.bf16.msra.mxu0 0
  %158 = vmatprep.subr.bf16.mxu0 0
  %159 = vmatpush1.bf16.msra.mxu0 0
  %160 = vmatprep.subr.bf16.mxu0 0
  %161 = vmatpush1.bf16.msra.mxu0 0
  %162 = vmatprep.subr.bf16.mxu0 0
  %163 = vmatpush1.bf16.msra.mxu0 0
  %164 = vmatprep.subr.bf16.mxu0 0
  %165 = vmatpush1.bf16.msra.mxu0 0
  %166 = vmatprep.subr.bf16.mxu0 0
  %167 = vmatpush1.bf16.msra.mxu0 0
  %168 = vmatprep.subr.bf16.mxu0 0
  %169 = vmatpush1.bf16.msra.mxu0 0
  %170 = vmatprep.subr.bf16.mxu0 0
  %171 = vmatpush1.bf16.msra.mxu0 0
  %172 = vmatprep.subr.bf16.mxu0 0
  %173 = vmatpush1.bf16.msra.mxu0 0
  %174 = vmatprep.subr.bf16.mxu0 0
  %175 = vmatpush1.bf16.msra.mxu0 0
  %176 = vmatprep.subr.bf16.mxu0 0
  %177 = vmatpush1.bf16.msra.mxu0 0
  %178 = vmatprep.subr.bf16.mxu0 0
  %179 = vmatpush1.bf16.msra.mxu0 0
  %180 = vmatprep.subr.bf16.mxu0 0
  %181 = vmatpush1.bf16.msra.mxu0 0
  %182 = vmatprep.mubr.bf16.mxu0 0
  %183 = vmatmul.mubr.bf16.gmra.mrb[0].mxu0 %v145
  %v184 = vpop.f32.mrb[0].mxu0
  %v185 = vadd.f32 0.0, %v184
  %v186 = vpop.f32.mrb[0].mxu0
  %v187 = vpop.f32.mrb[0].mxu0
  %v188 = vpop.f32.mrb[0].mxu0
  %189 = vdwg.mxu0
  %v190 = vrcp.pop %v137
  %v191 = vmul.f32 %v185, %v190
  %vm192 = vcmp.gt.f32.partialorder %v191, 0.0
  %v193 = vmin.f32 %v191, 0.0
  %v194 = vmul.f32 %v193, 1.442695
  %v195 = vpow.pop %v194
  %v196 = vsub.f32 %v195, 1.0
  %v197 = vsel %vm192, %v191, %v196
  %v198 = vpack.c.bf16 %v197, %v197
  %v200 = vunpack.c.l.b16 %v198
  %v201 = vpack.c.b16 %v200, %v200
  %202 = vrot.lane.b32.xlu0 %v201, 8
  %v203 = vpop.permute.xlu0 %202
  %vm205 = vcmask 126016
  %206 = vst.msk [vmem:[%s4] sm:$0xf] %vm205, %v203
  %v207 = vld [vmem:[%s2] sm:$0xff]
  %v208 = vld [vmem:[%s3 + $0x2] sm:$0x1]
  %210 = vset.pattern.permute.xlu0 2
  %211 = vperm.xlu0 %210, %v207
  %v212 = vpop.permute.xlu0 %211
  %v214 = vlaneseq
  %v215 = vshrl.u32 %v214, 7
  %v216 = vsub.s32 0, %v215
  %v217 = vrot.slane %v208, %v216
  %v218 = vadd.f32 %v212, %v217
  %vm219 = vcmp.gt.f32.partialorder %v218, 0.0
  %v220 = vmul.f32 %v218, 0.2
  %v221 = vsel %vm219, %v218, %v220
  %v222 = vsel %vm21, %v221, -9e+15
  %v223 = vsel %vm38, %v222, -inf
  %224 = vmax.xlane.f32.xlu0 %v223
  %v225 = vpop.xlane.xlu0 %224
  %v226 = vsub.f32 %v222, %v225
  %v227 = vpack.c.bf16 %v226, %v226
  %v229 = vmul.bf16 %v227, 1069105081
  %v230 = vpow.bf16.pop %v229
  %v231 = vunpack.c.l.bf16 %v230
  %v232 = vsel %vm38, %v231, 0.0
  %233 = vadd.xlane.f32.xlu0 %v232
  %v234 = vpop.xlane.xlu0 %233
  %v235 = vld [vmem:[%s0] sm:$0xf]
  %v237 = vunpack.c.l.b16 %v235
  %v238 = vpack.c.b16 %v237, %v237
  %239 = vrot.lane.b32.xlu0 %v238, 112
  %v240 = vpop.permute.xlu0 %239
  %v242 = vsel %vm38, %v230, 0
  %v245 = vsel %vm55, %v240, 0
  %247 = vmatprep.subr.bf16.mxu0 0
  %248 = vmatpush1.bf16.msra.mxu0 %v245
  %249 = vmatprep.subr.bf16.mxu0 0
  %250 = vmatpush1.bf16.msra.mxu0 0
  %251 = vmatprep.subr.bf16.mxu0 0
  %252 = vmatpush1.bf16.msra.mxu0 0
  %253 = vmatprep.subr.bf16.mxu0 0
  %254 = vmatpush1.bf16.msra.mxu0 0
  %255 = vmatprep.subr.bf16.mxu0 0
  %256 = vmatpush1.bf16.msra.mxu0 0
  %257 = vmatprep.subr.bf16.mxu0 0
  %258 = vmatpush1.bf16.msra.mxu0 0
  %259 = vmatprep.subr.bf16.mxu0 0
  %260 = vmatpush1.bf16.msra.mxu0 0
  %261 = vmatprep.subr.bf16.mxu0 0
  %262 = vmatpush1.bf16.msra.mxu0 0
  %263 = vmatprep.subr.bf16.mxu0 0
  %264 = vmatpush1.bf16.msra.mxu0 0
  %265 = vmatprep.subr.bf16.mxu0 0
  %266 = vmatpush1.bf16.msra.mxu0 0
  %267 = vmatprep.subr.bf16.mxu0 0
  %268 = vmatpush1.bf16.msra.mxu0 0
  %269 = vmatprep.subr.bf16.mxu0 0
  %270 = vmatpush1.bf16.msra.mxu0 0
  %271 = vmatprep.subr.bf16.mxu0 0
  %272 = vmatpush1.bf16.msra.mxu0 0
  %273 = vmatprep.subr.bf16.mxu0 0
  %274 = vmatpush1.bf16.msra.mxu0 0
  %275 = vmatprep.subr.bf16.mxu0 0
  %276 = vmatpush1.bf16.msra.mxu0 0
  %277 = vmatprep.subr.bf16.mxu0 0
  %278 = vmatpush1.bf16.msra.mxu0 0
  %279 = vmatprep.mubr.bf16.mxu0 0
  %280 = vmatmul.mubr.bf16.gmra.mrb[0].mxu0 %v242
  %v281 = vpop.f32.mrb[0].mxu0
  %v282 = vadd.f32 0.0, %v281
  %v283 = vpop.f32.mrb[0].mxu0
  %v284 = vpop.f32.mrb[0].mxu0
  %v285 = vpop.f32.mrb[0].mxu0
  %286 = vdwg.mxu0
  %v287 = vrcp.pop %v234
  %v288 = vmul.f32 %v282, %v287
  %vm289 = vcmp.gt.f32.partialorder %v288, 0.0
  %v290 = vmin.f32 %v288, 0.0
  %v291 = vmul.f32 %v290, 1.442695
  %v292 = vpow.pop %v291
  %v293 = vsub.f32 %v292, 1.0
  %v294 = vsel %vm289, %v288, %v293
  %v295 = vpack.c.bf16 %v294, %v294
  %v297 = vunpack.c.l.b16 %v295
  %v298 = vpack.c.b16 %v297, %v297
  %299 = vrot.lane.b32.xlu0 %v298, 16
  %v300 = vpop.permute.xlu0 %299
  %vm302 = vcmask 191616
  %303 = vst.msk [vmem:[%s4] sm:$0xf] %vm302, %v300
  %v304 = vld [vmem:[%s2] sm:$0xff]
  %v305 = vld [vmem:[%s3 + $0x3] sm:$0x1]
  %307 = vset.pattern.permute.xlu0 3
  %308 = vperm.xlu0 %307, %v304
  %v309 = vpop.permute.xlu0 %308
  %v311 = vlaneseq
  %v312 = vshrl.u32 %v311, 7
  %v313 = vsub.s32 0, %v312
  %v314 = vrot.slane %v305, %v313
  %v315 = vadd.f32 %v309, %v314
  %vm316 = vcmp.gt.f32.partialorder %v315, 0.0
  %v317 = vmul.f32 %v315, 0.2
  %v318 = vsel %vm316, %v315, %v317
  %v319 = vsel %vm21, %v318, -9e+15
  %v320 = vsel %vm38, %v319, -inf
  %321 = vmax.xlane.f32.xlu0 %v320
  %v322 = vpop.xlane.xlu0 %321
  %v323 = vsub.f32 %v319, %v322
  %v324 = vpack.c.bf16 %v323, %v323
  %v326 = vmul.bf16 %v324, 1069105081
  %v327 = vpow.bf16.pop %v326
  %v328 = vunpack.c.l.bf16 %v327
  %v329 = vsel %vm38, %v328, 0.0
  %330 = vadd.xlane.f32.xlu0 %v329
  %v331 = vpop.xlane.xlu0 %330
  %v332 = vld [vmem:[%s0] sm:$0xf]
  %v334 = vunpack.c.l.b16 %v332
  %v335 = vpack.c.b16 %v334, %v334
  %336 = vrot.lane.b32.xlu0 %v335, 104
  %v337 = vpop.permute.xlu0 %336
  %v339 = vsel %vm38, %v327, 0
  %v342 = vsel %vm55, %v337, 0
  %344 = vmatprep.subr.bf16.mxu0 0
  %345 = vmatpush1.bf16.msra.mxu0 %v342
  %346 = vmatprep.subr.bf16.mxu0 0
  %347 = vmatpush1.bf16.msra.mxu0 0
  %348 = vmatprep.subr.bf16.mxu0 0
  %349 = vmatpush1.bf16.msra.mxu0 0
  %350 = vmatprep.subr.bf16.mxu0 0
  %351 = vmatpush1.bf16.msra.mxu0 0
  %352 = vmatprep.subr.bf16.mxu0 0
  %353 = vmatpush1.bf16.msra.mxu0 0
  %354 = vmatprep.subr.bf16.mxu0 0
  %355 = vmatpush1.bf16.msra.mxu0 0
  %356 = vmatprep.subr.bf16.mxu0 0
  %357 = vmatpush1.bf16.msra.mxu0 0
  %358 = vmatprep.subr.bf16.mxu0 0
  %359 = vmatpush1.bf16.msra.mxu0 0
  %360 = vmatprep.subr.bf16.mxu0 0
  %361 = vmatpush1.bf16.msra.mxu0 0
  %362 = vmatprep.subr.bf16.mxu0 0
  %363 = vmatpush1.bf16.msra.mxu0 0
  %364 = vmatprep.subr.bf16.mxu0 0
  %365 = vmatpush1.bf16.msra.mxu0 0
  %366 = vmatprep.subr.bf16.mxu0 0
  %367 = vmatpush1.bf16.msra.mxu0 0
  %368 = vmatprep.subr.bf16.mxu0 0
  %369 = vmatpush1.bf16.msra.mxu0 0
  %370 = vmatprep.subr.bf16.mxu0 0
  %371 = vmatpush1.bf16.msra.mxu0 0
  %372 = vmatprep.subr.bf16.mxu0 0
  %373 = vmatpush1.bf16.msra.mxu0 0
  %374 = vmatprep.subr.bf16.mxu0 0
  %375 = vmatpush1.bf16.msra.mxu0 0
  %376 = vmatprep.mubr.bf16.mxu0 0
  %377 = vmatmul.mubr.bf16.gmra.mrb[0].mxu0 %v339
  %v378 = vpop.f32.mrb[0].mxu0
  %v379 = vadd.f32 0.0, %v378
  %v380 = vpop.f32.mrb[0].mxu0
  %v381 = vpop.f32.mrb[0].mxu0
  %v382 = vpop.f32.mrb[0].mxu0
  %383 = vdwg.mxu0
  %v384 = vrcp.pop %v331
  %v385 = vmul.f32 %v379, %v384
  %vm386 = vcmp.gt.f32.partialorder %v385, 0.0
  %v387 = vmin.f32 %v385, 0.0
  %v388 = vmul.f32 %v387, 1.442695
  %v389 = vpow.pop %v388
  %v390 = vsub.f32 %v389, 1.0
  %v391 = vsel %vm386, %v385, %v390
  %v392 = vpack.c.bf16 %v391, %v391
  %v394 = vunpack.c.l.b16 %v392
  %v395 = vpack.c.b16 %v394, %v394
  %396 = vrot.lane.b32.xlu0 %v395, 24
  %v397 = vpop.permute.xlu0 %396
  %vm399 = vcmask 257216
  %400 = vst.msk [vmem:[%s4] sm:$0xf] %vm399, %v397
  // Predicated region
  $region18: #{gat_forward.5} parent=0 // pred_check
    _
  $region19: #{gat_forward.5} parent=0 // pred_check_branch
    %402 = sbr.rel (0) target = $region21
  $region20: #{gat_forward.5} parent=0 // pred_region
    _
  $region21: #{gat_forward.5} parent=0 // pred_fallthru
    _
  // Predicated region
  $region22: #{gat_forward.5} parent=0 // pred_check
    _
  $region23: #{gat_forward.5} parent=0 // pred_check_branch
    %404 = sbr.rel (0) target = $region25
  $region24: #{gat_forward.5} parent=0 // pred_region
    _
  $region25: #{gat_forward.5} parent=0 // pred_fallthru
    _

</llo_original>
